<compile_context>
chip_gen: v7x
topology: tpu7x:2x2x1
jax: 0.10.0
libtpu: 0.0.40
codegen_flags: <defaults>
</compile_context>

<pallas_src>
import functools

import jax
import jax.numpy as jnp
from jax.experimental import pallas as pl
from jax.experimental.pallas import tpu as pltpu


def _round_up(n, m):
    return ((n + m - 1) // m) * m


def _char_decoder_kernel(x_ref, wih_ref, whh_ref, b_ref, wout_ref, bout_ref,
                         h0_ref, c0_ref,
                         scores_ref, hn_ref, cn_ref,
                         pre_ref,
                         *, seq_len, batch_p, gate_h, unroll):
    """Whole-sequence LSTM decoder in one kernel invocation.

    x_ref      : (L*Bp, Ep)   embedded chars, time-major, flattened & padded
    wih_ref    : (Ep, 4*Hg)   input->gate weights (transposed, packed gates)
    whh_ref    : (Hg, 4*Hg)   hidden->gate weights (transposed, packed gates)
    b_ref      : (1, 4*Hg)    combined bias (b_ih + b_hh), packed gates
    wout_ref   : (Hg, Vp)     output projection weights (transposed, padded)
    bout_ref   : (1, Vp)      output projection bias (padded)
    h0_ref     : (Bp, Hg)     initial hidden state (padded)
    c0_ref     : (Bp, Hg)     initial cell state (padded)
    scores_ref : (L*Bp, Vp)   output scores (padded, lane-dense)
    hn_ref     : (Bp, Hg)     final hidden state
    cn_ref     : (Bp, Hg)     final cell state
    pre_ref    : (L*Bp, 4*Hg) scratch: precomputed input projection + bias

    Gate slabs are packed [i | f | o | g], each Hg lanes wide (4*Hg % 128 == 0).
    """
    Bp = batch_p
    Hg = gate_h

    # ---- Prologue: input projection for every time step as ONE batched matmul.
    pre_ref[...] = (
        jnp.dot(x_ref[...], wih_ref[...], preferred_element_type=jnp.float32)
        + b_ref[...])

    # ---- Recurrence: only the h-dependent matmul and the tiny fused vocab
    # projection live inside the serial time loop.
    def step(t, carry):
        h_prev, c_prev = carry
        row = pl.multiple_of(t * Bp, Bp)          # sublane-aligned slice start
        gates = (pre_ref[pl.ds(row, Bp), :]
                 + jnp.dot(h_prev, whh_ref[...],
                           preferred_element_type=jnp.float32))
        # Packed gates [i | f | o | g]: one sigmoid over the contiguous 3*Hg
        # slab + one tanh(g).  Sub-vreg lane slices are cheap XLU relayouts.
        sig = jax.nn.sigmoid(gates[:, : 3 * Hg])
        g_g = jnp.tanh(gates[:, 3 * Hg:])
        i_g = sig[:, 0 * Hg:1 * Hg]
        f_g = sig[:, 1 * Hg:2 * Hg]
        o_g = sig[:, 2 * Hg:3 * Hg]
        c_new = f_g * c_prev + i_g * g_g
        h_new = o_g * jnp.tanh(c_new)
        # Fused vocab projection: the (Bp, Hg) x (Hg, Vp) matmul hides under the
        # step's EUP/VPU latency; store lane-dense (Vp multiple of 128).
        scores_ref[pl.ds(row, Bp), :] = (
            jnp.dot(h_new, wout_ref[...], preferred_element_type=jnp.float32)
            + bout_ref[...])
        return h_new, c_new

    h_fin, c_fin = jax.lax.fori_loop(
        0, seq_len, step, (h0_ref[...], c0_ref[...]), unroll=unroll)

    hn_ref[...] = h_fin
    cn_ref[...] = c_fin


def prepare_char_decoder_params(params):
    """One-time prep of weights into the kernel layout (call once, reuse).

    Pads / reorders / transposes the LSTM + projection weights so per-call
    forward() does no weight-side padding or transposition.
    """
    f32 = jnp.float32
    embedding = params["embedding"].astype(f32)     # (V_char, E)
    w_ih = params["w_ih"]                           # (4H, E)  PyTorch [i,f,g,o]
    w_hh = params["w_hh"]                           # (4H, H)
    b_ih = params["b_ih"]                           # (4H,)
    b_hh = params["b_hh"]                           # (4H,)
    w_out = params["w_out"]                         # (V_char, H)
    b_out = params["b_out"]                         # (V_char,)

    E = embedding.shape[1]
    H = w_hh.shape[1]
    V = w_out.shape[0]

    Ep = _round_up(E, 8)        # sublane-aligned K for the input projection
    Hg = _round_up(H, 32)       # packed gate slab width; 4*Hg % 128 == 0
    G = 4 * Hg
    Vp = _round_up(V, 128)      # lane-dense scores output

    def pack_gate_weight(w, in_dim, in_dim_p):      # w: (4H, in_dim)
        w4 = w.astype(f32).reshape(4, H, in_dim)
        # Reorder gate slabs [i,f,g,o] -> [i,f,o,g] so the kernel runs one
        # sigmoid over the first three contiguous slabs.  Zero padding keeps the
        # padded H lanes of h/c exactly 0 through the recurrence.
        w4 = jnp.stack([w4[0], w4[1], w4[3], w4[2]], axis=0)
        w4 = jnp.pad(w4, ((0, 0), (0, Hg - H), (0, in_dim_p - in_dim)))
        return jnp.transpose(w4, (2, 0, 1)).reshape(in_dim_p, G)

    b4 = (b_ih + b_hh).astype(f32).reshape(4, H)
    b4 = jnp.stack([b4[0], b4[1], b4[3], b4[2]], axis=0)

    prepared = {
        "embedding": jnp.pad(embedding, ((0, 0), (0, Ep - E))),          # (V, Ep)
        "w_ih": pack_gate_weight(w_ih, E, Ep),                           # (Ep, 4Hg)
        "w_hh": pack_gate_weight(w_hh, H, Hg),                           # (Hg, 4Hg)
        "bias": jnp.pad(b4, ((0, 0), (0, Hg - H))).reshape(1, G),        # (1, 4Hg)
        "w_out": jnp.pad(w_out.T.astype(f32), ((0, Hg - H), (0, Vp - V))),  # (Hg, Vp)
        "b_out": jnp.pad(b_out.astype(f32), (0, Vp - V)).reshape(1, Vp),    # (1, Vp)
        "dims": {"E": E, "Ep": Ep, "H": H, "Hg": Hg, "V": V, "Vp": Vp},
    }
    return jax.block_until_ready(prepared)


def char_decoder_forward(input_ids, prepared, dec_hidden=None):
    """Pallas implementation of CharDecoder.forward.

    input_ids : (L, B) int32 character ids
    prepared  : output of prepare_char_decoder_params (cached across calls)
    dec_hidden: optional ((1, B, H), (1, B, H)) tuple, defaults to zeros.

    Returns (scores, (h_n, c_n)) with scores (L, B, V_char) and h_n/c_n of
    shape (1, B, H) — identical semantics to the PyTorch module.
    """
    f32 = jnp.float32
    d = prepared["dims"]
    Ep, H, Hg, V, Vp = d["Ep"], d["H"], d["Hg"], d["V"], d["Vp"]
    G = 4 * Hg

    L, B = input_ids.shape
    Bp = _round_up(B, 8)        # f32 sublanes
    LB = L * Bp

    # TODO(synk): embedding gather stays in plain JAX (jnp.take); a DMA-gather
    # Pallas variant is not worthwhile at these sizes.  (jnp.take clips
    # out-of-range ids instead of raising like nn.Embedding would.)
    x_emb = jnp.take(prepared["embedding"], input_ids, axis=0)       # (L, B, Ep)
    x_flat = jnp.pad(x_emb, ((0, 0), (0, Bp - B), (0, 0))).reshape(LB, Ep)

    if dec_hidden is None:
        h0_p = jnp.zeros((Bp, Hg), f32)
        c0_p = jnp.zeros((Bp, Hg), f32)
    else:
        h0 = dec_hidden[0][0].astype(f32)
        c0 = dec_hidden[1][0].astype(f32)
        h0_p = jnp.pad(h0, ((0, Bp - B), (0, Hg - H)))
        c0_p = jnp.pad(c0, ((0, Bp - B), (0, Hg - H)))

    # Fully unroll only short sequences; bound vreg live ranges otherwise.
    unroll = True if L <= 16 else 8

    kernel = functools.partial(_char_decoder_kernel,
                               seq_len=L, batch_p=Bp, gate_h=Hg, unroll=unroll)

    # Explicit VMEM budget with headroom (guards the all-sequence-resident
    # strategy at real sizes; v7x only has 64 MiB of VMEM per TensorCore).
    vmem_est = 4 * (LB * Ep + Ep * G + Hg * G + G + Hg * Vp + Vp
                    + 4 * Bp * Hg + LB * Vp + LB * G)
    vmem_limit = int(min(64 * 1024 * 1024, max(2 * vmem_est, 4 * 1024 * 1024)))

    # TODO(synk): for larger padded batches (Bp >= 16) add a leading "parallel"
    # grid axis over Bp-chunks to engage the second TensorCore on v7x.
    scores_flat, hn_p, cn_p = pl.pallas_call(
        kernel,
        grid=(1,),
        in_specs=[
            pl.BlockSpec((LB, Ep), lambda i: (0, 0)),    # x (flattened, padded)
            pl.BlockSpec((Ep, G), lambda i: (0, 0)),     # W_ih^T (packed gates)
            pl.BlockSpec((Hg, G), lambda i: (0, 0)),     # W_hh^T (packed gates)
            pl.BlockSpec((1, G), lambda i: (0, 0)),      # combined bias
            pl.BlockSpec((Hg, Vp), lambda i: (0, 0)),    # W_out^T
            pl.BlockSpec((1, Vp), lambda i: (0, 0)),     # b_out
            pl.BlockSpec((Bp, Hg), lambda i: (0, 0)),    # h0
            pl.BlockSpec((Bp, Hg), lambda i: (0, 0)),    # c0
        ],
        out_specs=(
            pl.BlockSpec((LB, Vp), lambda i: (0, 0)),    # scores (lane-dense)
            pl.BlockSpec((Bp, Hg), lambda i: (0, 0)),    # h_n
            pl.BlockSpec((Bp, Hg), lambda i: (0, 0)),    # c_n
        ),
        out_shape=(
            jax.ShapeDtypeStruct((LB, Vp), f32),
            jax.ShapeDtypeStruct((Bp, Hg), f32),
            jax.ShapeDtypeStruct((Bp, Hg), f32),
        ),
        scratch_shapes=[
            pltpu.VMEM((LB, G), f32),    # pre-gates for all time steps
        ],
        compiler_params=pltpu.CompilerParams(
            dimension_semantics=("arbitrary",),
            vmem_limit_bytes=vmem_limit,
        ),
    )(x_flat, prepared["w_ih"], prepared["w_hh"], prepared["bias"],
      prepared["w_out"], prepared["b_out"], h0_p, c0_p)

    scores = scores_flat.reshape(L, Bp, Vp)[:, :B, :V]
    h_n = hn_p[:B, :H][None]
    c_n = cn_p[:B, :H][None]
    return scores, (h_n, c_n)


def init_params(key, vocab_size, char_embedding_size, hidden_size, pad_idx=0):
    """Deterministic synthetic parameter init matching nn.LSTM/Linear/Embedding shapes."""
    V, E, H = vocab_size, char_embedding_size, hidden_size
    ks = jax.random.split(key, 7)
    scale = 1.0 / jnp.sqrt(jnp.float32(H))
    emb = jax.random.normal(ks[0], (V, E), jnp.float32) * 0.1
    emb = emb.at[pad_idx].set(0.0)  # padding_idx row zeroed, as nn.Embedding does
    params = {
        "embedding": emb,
        "w_ih": jax.random.uniform(ks[1], (4 * H, E), jnp.float32, -scale, scale),
        "w_hh": jax.random.uniform(ks[2], (4 * H, H), jnp.float32, -scale, scale),
        "b_ih": jax.random.uniform(ks[3], (4 * H,), jnp.float32, -scale, scale),
        "b_hh": jax.random.uniform(ks[4], (4 * H,), jnp.float32, -scale, scale),
        "w_out": jax.random.uniform(ks[5], (V, H), jnp.float32, -scale, scale),
        "b_out": jax.random.uniform(ks[6], (V,), jnp.float32, -scale, scale),
    }
    return params


def _reference_forward(input_ids, params, dec_hidden=None):
    """Pure-JAX reference (lax.scan LSTM) for numerical verification.

    Matmuls run at HIGHEST precision so the f32 reference matches the kernel's
    full-precision f32 MXU passes (default XLA precision truncates to bf16).
    """
    hp = jax.lax.Precision.HIGHEST
    emb = params["embedding"]
    w_ih, w_hh = params["w_ih"], params["w_hh"]
    b_ih, b_hh = params["b_ih"], params["b_hh"]
    w_out, b_out = params["w_out"], params["b_out"]
    H = w_hh.shape[1]
    L, B = input_ids.shape
    x = jnp.take(emb, input_ids, axis=0)
    if dec_hidden is None:
        h0 = jnp.zeros((B, H), jnp.float32)
        c0 = jnp.zeros((B, H), jnp.float32)
    else:
        h0, c0 = dec_hidden[0][0], dec_hidden[1][0]

    def step(carry, x_t):
        h, c = carry
        gates = (jnp.dot(x_t, w_ih.T, precision=hp)
                 + jnp.dot(h, w_hh.T, precision=hp) + b_ih + b_hh)
        i = jax.nn.sigmoid(gates[:, 0 * H:1 * H])
        f = jax.nn.sigmoid(gates[:, 1 * H:2 * H])
        g = jnp.tanh(gates[:, 2 * H:3 * H])
        o = jax.nn.sigmoid(gates[:, 3 * H:4 * H])
        c_new = f * c + i * g
        h_new = o * jnp.tanh(c_new)
        return (h_new, c_new), h_new

    (h_n, c_n), hs = jax.lax.scan(step, (h0, c0), x)
    scores = jnp.dot(hs, w_out.T, precision=hp) + b_out
    return scores, (h_n[None], c_n[None])


if __name__ == "__main__":
    # Small shapes implied by the module's forward(): input (length, batch) ids.
    L, B = 8, 4
    HIDDEN = 32
    CHAR_EMB = 50
    V_CHAR = 30          # synthetic char vocab size
    PAD_IDX = 0

    key = jax.random.PRNGKey(0)
    k_params, k_ids, k_h, k_c = jax.random.split(key, 4)

    params = init_params(k_params, V_CHAR, CHAR_EMB, HIDDEN, pad_idx=PAD_IDX)
    prepared = prepare_char_decoder_params(params)   # one-time weight prep

    input_ids = jax.random.randint(k_ids, (L, B), 0, V_CHAR, dtype=jnp.int32)
    dec_hidden = (
        jax.random.normal(k_h, (1, B, HIDDEN), jnp.float32) * 0.1,
        jax.random.normal(k_c, (1, B, HIDDEN), jnp.float32) * 0.1,
    )

    scores, (h_n, c_n) = char_decoder_forward(input_ids, prepared, dec_hidden)
    jax.block_until_ready((scores, h_n, c_n))

    # Sanity check against pure-JAX reference.
    ref_scores, (ref_h, ref_c) = _reference_forward(input_ids, params, dec_hidden)
    assert scores.shape == (L, B, V_CHAR)
    assert h_n.shape == (1, B, HIDDEN) and c_n.shape == (1, B, HIDDEN)
    assert jnp.allclose(scores, ref_scores, atol=1e-5, rtol=1e-5)
    assert jnp.allclose(h_n, ref_h, atol=1e-5, rtol=1e-5)
    assert jnp.allclose(c_n, ref_c, atol=1e-5, rtol=1e-5)

    print("KERNEL_OK")
</pallas_src>

<mosaic_0001>
module attributes {stable_mosaic.version = 11 : i64} {
  func.func @_char_decoder_kernel(%arg0: i32, %arg1: memref<64x56xf32, #tpu.memory_space<vmem>>, %arg2: memref<56x128xf32, #tpu.memory_space<vmem>>, %arg3: memref<32x128xf32, #tpu.memory_space<vmem>>, %arg4: memref<1x128xf32, #tpu.memory_space<vmem>>, %arg5: memref<32x128xf32, #tpu.memory_space<vmem>>, %arg6: memref<1x128xf32, #tpu.memory_space<vmem>>, %arg7: memref<8x32xf32, #tpu.memory_space<vmem>>, %arg8: memref<8x32xf32, #tpu.memory_space<vmem>>, %arg9: memref<64x128xf32, #tpu.memory_space<vmem>>, %arg10: memref<8x32xf32, #tpu.memory_space<vmem>>, %arg11: memref<8x32xf32, #tpu.memory_space<vmem>>, %arg12: memref<64x128xf32, #tpu.memory_space<vmem>>) attributes {dimension_semantics = [#tpu.dimension_semantics<arbitrary>], iteration_bounds = array<i64: 1>, scalar_prefetch = 0 : i64, scratch_operands = 1 : i64, tpu.core_type = #tpu.core_type<tc>, window_params = [{pipeline_mode = #tpu.pipeline_mode<synchronous>, transform_indices = @transform_0, window_bounds = array<i64: 64, 56>}, {pipeline_mode = #tpu.pipeline_mode<synchronous>, transform_indices = @transform_1, window_bounds = array<i64: 56, 128>}, {pipeline_mode = #tpu.pipeline_mode<synchronous>, transform_indices = @transform_2, window_bounds = array<i64: 32, 128>}, {pipeline_mode = #tpu.pipeline_mode<synchronous>, transform_indices = @transform_3, window_bounds = array<i64: 1, 128>}, {pipeline_mode = #tpu.pipeline_mode<synchronous>, transform_indices = @transform_4, window_bounds = array<i64: 32, 128>}, {pipeline_mode = #tpu.pipeline_mode<synchronous>, transform_indices = @transform_5, window_bounds = array<i64: 1, 128>}, {pipeline_mode = #tpu.pipeline_mode<synchronous>, transform_indices = @transform_6, window_bounds = array<i64: 8, 32>}, {pipeline_mode = #tpu.pipeline_mode<synchronous>, transform_indices = @transform_7, window_bounds = array<i64: 8, 32>}, {pipeline_mode = #tpu.pipeline_mode<synchronous>, transform_indices = @transform_8, window_bounds = array<i64: 64, 128>}, {pipeline_mode = #tpu.pipeline_mode<synchronous>, transform_indices = @transform_9, window_bounds = array<i64: 8, 32>}, {pipeline_mode = #tpu.pipeline_mode<synchronous>, transform_indices = @transform_10, window_bounds = array<i64: 8, 32>}]} {
    %c0 = arith.constant 0 : index
    %c0_0 = arith.constant 0 : index
    %0 = vector.load %arg1[%c0, %c0_0] : memref<64x56xf32, #tpu.memory_space<vmem>>, vector<64x56xf32>
    %c0_1 = arith.constant 0 : index
    %c0_2 = arith.constant 0 : index
    %1 = vector.load %arg2[%c0_1, %c0_2] : memref<56x128xf32, #tpu.memory_space<vmem>>, vector<56x128xf32>
    %cst = arith.constant dense<0.000000e+00> : vector<64x128xf32>
    %2 = tpu.matmul %0, %1, %cst {dimension_numbers = #tpu.dot_dimension_numbers<[1], [0], [0], [1], [0, 0, 1, 1], [], []>} : vector<64x56xf32>, vector<56x128xf32>, vector<64x128xf32> -> vector<64x128xf32>
    %c0_3 = arith.constant 0 : index
    %c0_4 = arith.constant 0 : index
    %3 = vector.load %arg4[%c0_3, %c0_4] : memref<1x128xf32, #tpu.memory_space<vmem>>, vector<1x128xf32>
    %4 = vector.broadcast %3 : vector<1x128xf32> to vector<64x128xf32>
    %5 = arith.addf %2, %4 : vector<64x128xf32>
    %c0_5 = arith.constant 0 : index
    %c0_6 = arith.constant 0 : index
    %6 = vector.load %arg12[%c0_5, %c0_6] : memref<64x128xf32, #tpu.memory_space<vmem>>, vector<64x128xf32>
    tpu.vector_store %arg12[%c0_5, %c0_6], %5 {strides = array<i32>} : memref<64x128xf32, #tpu.memory_space<vmem>>, vector<64x128xf32>,
    %c0_7 = arith.constant 0 : index
    %c0_8 = arith.constant 0 : index
    %7 = vector.load %arg7[%c0_7, %c0_8] : memref<8x32xf32, #tpu.memory_space<vmem>>, vector<8x32xf32>
    %c0_9 = arith.constant 0 : index
    %c0_10 = arith.constant 0 : index
    %8 = vector.load %arg8[%c0_9, %c0_10] : memref<8x32xf32, #tpu.memory_space<vmem>>, vector<8x32xf32>
    %c0_i32 = arith.constant 0 : i32
    %c8_i32 = arith.constant 8 : i32
    %9 = arith.muli %c0_i32, %c8_i32 : i32
    %10 = tpu.assume_multiple %9, 8 : i32
    %11 = arith.index_cast %10 : i32 to index
    %c0_11 = arith.constant 0 : index
    %12 = vector.load %arg12[%11, %c0_11] : memref<64x128xf32, #tpu.memory_space<vmem>>, vector<8x128xf32>
    %c0_12 = arith.constant 0 : index
    %c0_13 = arith.constant 0 : index
    %13 = vector.load %arg3[%c0_12, %c0_13] : memref<32x128xf32, #tpu.memory_space<vmem>>, vector<32x128xf32>
    %cst_14 = arith.constant dense<0.000000e+00> : vector<8x128xf32>
    %14 = tpu.matmul %7, %13, %cst_14 {dimension_numbers = #tpu.dot_dimension_numbers<[1], [0], [0], [1], [0, 0, 1, 1], [], []>} : vector<8x32xf32>, vector<32x128xf32>, vector<8x128xf32> -> vector<8x128xf32>
    %15 = arith.addf %12, %14 : vector<8x128xf32>
    %16 = vector.extract_strided_slice %15 {offsets = [0, 0], sizes = [8, 96], strides = [1, 1]} : vector<8x128xf32> to vector<8x96xf32>
    %17 = arith.negf %16 : vector<8x96xf32>
    %18 = math.exp %17 : vector<8x96xf32>
    %cst_15 = arith.constant 1.000000e+00 : f32
    %19 = vector.broadcast %cst_15 : f32 to vector<8x96xf32>
    %20 = arith.addf %19, %18 : vector<8x96xf32>
    %21 = arith.divf %19, %20 : vector<8x96xf32>
    %22 = vector.extract_strided_slice %15 {offsets = [0, 96], sizes = [8, 32], strides = [1, 1]} : vector<8x128xf32> to vector<8x32xf32>
    %23 = math.tanh %22 : vector<8x32xf32>
    %24 = vector.extract_strided_slice %21 {offsets = [0, 0], sizes = [8, 32], strides = [1, 1]} : vector<8x96xf32> to vector<8x32xf32>
    %25 = vector.extract_strided_slice %21 {offsets = [0, 32], sizes = [8, 32], strides = [1, 1]} : vector<8x96xf32> to vector<8x32xf32>
    %26 = vector.extract_strided_slice %21 {offsets = [0, 64], sizes = [8, 32], strides = [1, 1]} : vector<8x96xf32> to vector<8x32xf32>
    %27 = arith.mulf %25, %8 : vector<8x32xf32>
    %28 = arith.mulf %24, %23 : vector<8x32xf32>
    %29 = arith.addf %27, %28 : vector<8x32xf32>
    %30 = math.tanh %29 : vector<8x32xf32>
    %31 = arith.mulf %26, %30 : vector<8x32xf32>
    %c0_16 = arith.constant 0 : index
    %c0_17 = arith.constant 0 : index
    %32 = vector.load %arg5[%c0_16, %c0_17] : memref<32x128xf32, #tpu.memory_space<vmem>>, vector<32x128xf32>
    %cst_18 = arith.constant dense<0.000000e+00> : vector<8x128xf32>
    %33 = tpu.matmul %31, %32, %cst_18 {dimension_numbers = #tpu.dot_dimension_numbers<[1], [0], [0], [1], [0, 0, 1, 1], [], []>} : vector<8x32xf32>, vector<32x128xf32>, vector<8x128xf32> -> vector<8x128xf32>
    %c0_19 = arith.constant 0 : index
    %c0_20 = arith.constant 0 : index
    %34 = vector.load %arg6[%c0_19, %c0_20] : memref<1x128xf32, #tpu.memory_space<vmem>>, vector<1x128xf32>
    %35 = vector.broadcast %34 : vector<1x128xf32> to vector<8x128xf32>
    %36 = arith.addf %33, %35 : vector<8x128xf32>
    %37 = arith.index_cast %10 : i32 to index
    %c0_21 = arith.constant 0 : index
    %38 = vector.load %arg9[%37, %c0_21] : memref<64x128xf32, #tpu.memory_space<vmem>>, vector<8x128xf32>
    tpu.vector_store %arg9[%37, %c0_21], %36 {strides = array<i32>} : memref<64x128xf32, #tpu.memory_space<vmem>>, vector<8x128xf32>,
    %c1_i32 = arith.constant 1 : i32
    %c8_i32_22 = arith.constant 8 : i32
    %39 = arith.muli %c1_i32, %c8_i32_22 : i32
    %40 = tpu.assume_multiple %39, 8 : i32
    %41 = arith.index_cast %40 : i32 to index
    %c0_23 = arith.constant 0 : index
    %42 = vector.load %arg12[%41, %c0_23] : memref<64x128xf32, #tpu.memory_space<vmem>>, vector<8x128xf32>
    %c0_24 = arith.constant 0 : index
    %c0_25 = arith.constant 0 : index
    %43 = vector.load %arg3[%c0_24, %c0_25] : memref<32x128xf32, #tpu.memory_space<vmem>>, vector<32x128xf32>
    %cst_26 = arith.constant dense<0.000000e+00> : vector<8x128xf32>
    %44 = tpu.matmul %31, %43, %cst_26 {dimension_numbers = #tpu.dot_dimension_numbers<[1], [0], [0], [1], [0, 0, 1, 1], [], []>} : vector<8x32xf32>, vector<32x128xf32>, vector<8x128xf32> -> vector<8x128xf32>
    %45 = arith.addf %42, %44 : vector<8x128xf32>
    %46 = vector.extract_strided_slice %45 {offsets = [0, 0], sizes = [8, 96], strides = [1, 1]} : vector<8x128xf32> to vector<8x96xf32>
    %47 = arith.negf %46 : vector<8x96xf32>
    %48 = math.exp %47 : vector<8x96xf32>
    %cst_27 = arith.constant 1.000000e+00 : f32
    %49 = vector.broadcast %cst_27 : f32 to vector<8x96xf32>
    %50 = arith.addf %49, %48 : vector<8x96xf32>
    %51 = arith.divf %49, %50 : vector<8x96xf32>
    %52 = vector.extract_strided_slice %45 {offsets = [0, 96], sizes = [8, 32], strides = [1, 1]} : vector<8x128xf32> to vector<8x32xf32>
    %53 = math.tanh %52 : vector<8x32xf32>
    %54 = vector.extract_strided_slice %51 {offsets = [0, 0], sizes = [8, 32], strides = [1, 1]} : vector<8x96xf32> to vector<8x32xf32>
    %55 = vector.extract_strided_slice %51 {offsets = [0, 32], sizes = [8, 32], strides = [1, 1]} : vector<8x96xf32> to vector<8x32xf32>
    %56 = vector.extract_strided_slice %51 {offsets = [0, 64], sizes = [8, 32], strides = [1, 1]} : vector<8x96xf32> to vector<8x32xf32>
    %57 = arith.mulf %55, %29 : vector<8x32xf32>
    %58 = arith.mulf %54, %53 : vector<8x32xf32>
    %59 = arith.addf %57, %58 : vector<8x32xf32>
    %60 = math.tanh %59 : vector<8x32xf32>
    %61 = arith.mulf %56, %60 : vector<8x32xf32>
    %c0_28 = arith.constant 0 : index
    %c0_29 = arith.constant 0 : index
    %62 = vector.load %arg5[%c0_28, %c0_29] : memref<32x128xf32, #tpu.memory_space<vmem>>, vector<32x128xf32>
    %cst_30 = arith.constant dense<0.000000e+00> : vector<8x128xf32>
    %63 = tpu.matmul %61, %62, %cst_30 {dimension_numbers = #tpu.dot_dimension_numbers<[1], [0], [0], [1], [0, 0, 1, 1], [], []>} : vector<8x32xf32>, vector<32x128xf32>, vector<8x128xf32> -> vector<8x128xf32>
    %c0_31 = arith.constant 0 : index
    %c0_32 = arith.constant 0 : index
    %64 = vector.load %arg6[%c0_31, %c0_32] : memref<1x128xf32, #tpu.memory_space<vmem>>, vector<1x128xf32>
    %65 = vector.broadcast %64 : vector<1x128xf32> to vector<8x128xf32>
    %66 = arith.addf %63, %65 : vector<8x128xf32>
    %67 = arith.index_cast %40 : i32 to index
    %c0_33 = arith.constant 0 : index
    %68 = vector.load %arg9[%67, %c0_33] : memref<64x128xf32, #tpu.memory_space<vmem>>, vector<8x128xf32>
    tpu.vector_store %arg9[%67, %c0_33], %66 {strides = array<i32>} : memref<64x128xf32, #tpu.memory_space<vmem>>, vector<8x128xf32>,
    %c2_i32 = arith.constant 2 : i32
    %c8_i32_34 = arith.constant 8 : i32
    %69 = arith.muli %c2_i32, %c8_i32_34 : i32
    %70 = tpu.assume_multiple %69, 8 : i32
    %71 = arith.index_cast %70 : i32 to index
    %c0_35 = arith.constant 0 : index
    %72 = vector.load %arg12[%71, %c0_35] : memref<64x128xf32, #tpu.memory_space<vmem>>, vector<8x128xf32>
    %c0_36 = arith.constant 0 : index
    %c0_37 = arith.constant 0 : index
    %73 = vector.load %arg3[%c0_36, %c0_37] : memref<32x128xf32, #tpu.memory_space<vmem>>, vector<32x128xf32>
    %cst_38 = arith.constant dense<0.000000e+00> : vector<8x128xf32>
    %74 = tpu.matmul %61, %73, %cst_38 {dimension_numbers = #tpu.dot_dimension_numbers<[1], [0], [0], [1], [0, 0, 1, 1], [], []>} : vector<8x32xf32>, vector<32x128xf32>, vector<8x128xf32> -> vector<8x128xf32>
    %75 = arith.addf %72, %74 : vector<8x128xf32>
    %76 = vector.extract_strided_slice %75 {offsets = [0, 0], sizes = [8, 96], strides = [1, 1]} : vector<8x128xf32> to vector<8x96xf32>
    %77 = arith.negf %76 : vector<8x96xf32>
    %78 = math.exp %77 : vector<8x96xf32>
    %cst_39 = arith.constant 1.000000e+00 : f32
    %79 = vector.broadcast %cst_39 : f32 to vector<8x96xf32>
    %80 = arith.addf %79, %78 : vector<8x96xf32>
    %81 = arith.divf %79, %80 : vector<8x96xf32>
    %82 = vector.extract_strided_slice %75 {offsets = [0, 96], sizes = [8, 32], strides = [1, 1]} : vector<8x128xf32> to vector<8x32xf32>
    %83 = math.tanh %82 : vector<8x32xf32>
    %84 = vector.extract_strided_slice %81 {offsets = [0, 0], sizes = [8, 32], strides = [1, 1]} : vector<8x96xf32> to vector<8x32xf32>
    %85 = vector.extract_strided_slice %81 {offsets = [0, 32], sizes = [8, 32], strides = [1, 1]} : vector<8x96xf32> to vector<8x32xf32>
    %86 = vector.extract_strided_slice %81 {offsets = [0, 64], sizes = [8, 32], strides = [1, 1]} : vector<8x96xf32> to vector<8x32xf32>
    %87 = arith.mulf %85, %59 : vector<8x32xf32>
    %88 = arith.mulf %84, %83 : vector<8x32xf32>
    %89 = arith.addf %87, %88 : vector<8x32xf32>
    %90 = math.tanh %89 : vector<8x32xf32>
    %91 = arith.mulf %86, %90 : vector<8x32xf32>
    %c0_40 = arith.constant 0 : index
    %c0_41 = arith.constant 0 : index
    %92 = vector.load %arg5[%c0_40, %c0_41] : memref<32x128xf32, #tpu.memory_space<vmem>>, vector<32x128xf32>
    %cst_42 = arith.constant dense<0.000000e+00> : vector<8x128xf32>
    %93 = tpu.matmul %91, %92, %cst_42 {dimension_numbers = #tpu.dot_dimension_numbers<[1], [0], [0], [1], [0, 0, 1, 1], [], []>} : vector<8x32xf32>, vector<32x128xf32>, vector<8x128xf32> -> vector<8x128xf32>
    %c0_43 = arith.constant 0 : index
    %c0_44 = arith.constant 0 : index
    %94 = vector.load %arg6[%c0_43, %c0_44] : memref<1x128xf32, #tpu.memory_space<vmem>>, vector<1x128xf32>
    %95 = vector.broadcast %94 : vector<1x128xf32> to vector<8x128xf32>
    %96 = arith.addf %93, %95 : vector<8x128xf32>
    %97 = arith.index_cast %70 : i32 to index
    %c0_45 = arith.constant 0 : index
    %98 = vector.load %arg9[%97, %c0_45] : memref<64x128xf32, #tpu.memory_space<vmem>>, vector<8x128xf32>
    tpu.vector_store %arg9[%97, %c0_45], %96 {strides = array<i32>} : memref<64x128xf32, #tpu.memory_space<vmem>>, vector<8x128xf32>,
    %c3_i32 = arith.constant 3 : i32
    %c8_i32_46 = arith.constant 8 : i32
    %99 = arith.muli %c3_i32, %c8_i32_46 : i32
    %100 = tpu.assume_multiple %99, 8 : i32
    %101 = arith.index_cast %100 : i32 to index
    %c0_47 = arith.constant 0 : index
    %102 = vector.load %arg12[%101, %c0_47] : memref<64x128xf32, #tpu.memory_space<vmem>>, vector<8x128xf32>
    %c0_48 = arith.constant 0 : index
    %c0_49 = arith.constant 0 : index
    %103 = vector.load %arg3[%c0_48, %c0_49] : memref<32x128xf32, #tpu.memory_space<vmem>>, vector<32x128xf32>
    %cst_50 = arith.constant dense<0.000000e+00> : vector<8x128xf32>
    %104 = tpu.matmul %91, %103, %cst_50 {dimension_numbers = #tpu.dot_dimension_numbers<[1], [0], [0], [1], [0, 0, 1, 1], [], []>} : vector<8x32xf32>, vector<32x128xf32>, vector<8x128xf32> -> vector<8x128xf32>
    %105 = arith.addf %102, %104 : vector<8x128xf32>
    %106 = vector.extract_strided_slice %105 {offsets = [0, 0], sizes = [8, 96], strides = [1, 1]} : vector<8x128xf32> to vector<8x96xf32>
    %107 = arith.negf %106 : vector<8x96xf32>
    %108 = math.exp %107 : vector<8x96xf32>
    %cst_51 = arith.constant 1.000000e+00 : f32
    %109 = vector.broadcast %cst_51 : f32 to vector<8x96xf32>
    %110 = arith.addf %109, %108 : vector<8x96xf32>
    %111 = arith.divf %109, %110 : vector<8x96xf32>
    %112 = vector.extract_strided_slice %105 {offsets = [0, 96], sizes = [8, 32], strides = [1, 1]} : vector<8x128xf32> to vector<8x32xf32>
    %113 = math.tanh %112 : vector<8x32xf32>
    %114 = vector.extract_strided_slice %111 {offsets = [0, 0], sizes = [8, 32], strides = [1, 1]} : vector<8x96xf32> to vector<8x32xf32>
    %115 = vector.extract_strided_slice %111 {offsets = [0, 32], sizes = [8, 32], strides = [1, 1]} : vector<8x96xf32> to vector<8x32xf32>
    %116 = vector.extract_strided_slice %111 {offsets = [0, 64], sizes = [8, 32], strides = [1, 1]} : vector<8x96xf32> to vector<8x32xf32>
    %117 = arith.mulf %115, %89 : vector<8x32xf32>
    %118 = arith.mulf %114, %113 : vector<8x32xf32>
    %119 = arith.addf %117, %118 : vector<8x32xf32>
    %120 = math.tanh %119 : vector<8x32xf32>
    %121 = arith.mulf %116, %120 : vector<8x32xf32>
    %c0_52 = arith.constant 0 : index
    %c0_53 = arith.constant 0 : index
    %122 = vector.load %arg5[%c0_52, %c0_53] : memref<32x128xf32, #tpu.memory_space<vmem>>, vector<32x128xf32>
    %cst_54 = arith.constant dense<0.000000e+00> : vector<8x128xf32>
    %123 = tpu.matmul %121, %122, %cst_54 {dimension_numbers = #tpu.dot_dimension_numbers<[1], [0], [0], [1], [0, 0, 1, 1], [], []>} : vector<8x32xf32>, vector<32x128xf32>, vector<8x128xf32> -> vector<8x128xf32>
    %c0_55 = arith.constant 0 : index
    %c0_56 = arith.constant 0 : index
    %124 = vector.load %arg6[%c0_55, %c0_56] : memref<1x128xf32, #tpu.memory_space<vmem>>, vector<1x128xf32>
    %125 = vector.broadcast %124 : vector<1x128xf32> to vector<8x128xf32>
    %126 = arith.addf %123, %125 : vector<8x128xf32>
    %127 = arith.index_cast %100 : i32 to index
    %c0_57 = arith.constant 0 : index
    %128 = vector.load %arg9[%127, %c0_57] : memref<64x128xf32, #tpu.memory_space<vmem>>, vector<8x128xf32>
    tpu.vector_store %arg9[%127, %c0_57], %126 {strides = array<i32>} : memref<64x128xf32, #tpu.memory_space<vmem>>, vector<8x128xf32>,
    %c4_i32 = arith.constant 4 : i32
    %c8_i32_58 = arith.constant 8 : i32
    %129 = arith.muli %c4_i32, %c8_i32_58 : i32
    %130 = tpu.assume_multiple %129, 8 : i32
    %131 = arith.index_cast %130 : i32 to index
    %c0_59 = arith.constant 0 : index
    %132 = vector.load %arg12[%131, %c0_59] : memref<64x128xf32, #tpu.memory_space<vmem>>, vector<8x128xf32>
    %c0_60 = arith.constant 0 : index
    %c0_61 = arith.constant 0 : index
    %133 = vector.load %arg3[%c0_60, %c0_61] : memref<32x128xf32, #tpu.memory_space<vmem>>, vector<32x128xf32>
    %cst_62 = arith.constant dense<0.000000e+00> : vector<8x128xf32>
    %134 = tpu.matmul %121, %133, %cst_62 {dimension_numbers = #tpu.dot_dimension_numbers<[1], [0], [0], [1], [0, 0, 1, 1], [], []>} : vector<8x32xf32>, vector<32x128xf32>, vector<8x128xf32> -> vector<8x128xf32>
    %135 = arith.addf %132, %134 : vector<8x128xf32>
    %136 = vector.extract_strided_slice %135 {offsets = [0, 0], sizes = [8, 96], strides = [1, 1]} : vector<8x128xf32> to vector<8x96xf32>
    %137 = arith.negf %136 : vector<8x96xf32>
    %138 = math.exp %137 : vector<8x96xf32>
    %cst_63 = arith.constant 1.000000e+00 : f32
    %139 = vector.broadcast %cst_63 : f32 to vector<8x96xf32>
    %140 = arith.addf %139, %138 : vector<8x96xf32>
    %141 = arith.divf %139, %140 : vector<8x96xf32>
    %142 = vector.extract_strided_slice %135 {offsets = [0, 96], sizes = [8, 32], strides = [1, 1]} : vector<8x128xf32> to vector<8x32xf32>
    %143 = math.tanh %142 : vector<8x32xf32>
    %144 = vector.extract_strided_slice %141 {offsets = [0, 0], sizes = [8, 32], strides = [1, 1]} : vector<8x96xf32> to vector<8x32xf32>
    %145 = vector.extract_strided_slice %141 {offsets = [0, 32], sizes = [8, 32], strides = [1, 1]} : vector<8x96xf32> to vector<8x32xf32>
    %146 = vector.extract_strided_slice %141 {offsets = [0, 64], sizes = [8, 32], strides = [1, 1]} : vector<8x96xf32> to vector<8x32xf32>
    %147 = arith.mulf %145, %119 : vector<8x32xf32>
    %148 = arith.mulf %144, %143 : vector<8x32xf32>
    %149 = arith.addf %147, %148 : vector<8x32xf32>
    %150 = math.tanh %149 : vector<8x32xf32>
    %151 = arith.mulf %146, %150 : vector<8x32xf32>
    %c0_64 = arith.constant 0 : index
    %c0_65 = arith.constant 0 : index
    %152 = vector.load %arg5[%c0_64, %c0_65] : memref<32x128xf32, #tpu.memory_space<vmem>>, vector<32x128xf32>
    %cst_66 = arith.constant dense<0.000000e+00> : vector<8x128xf32>
    %153 = tpu.matmul %151, %152, %cst_66 {dimension_numbers = #tpu.dot_dimension_numbers<[1], [0], [0], [1], [0, 0, 1, 1], [], []>} : vector<8x32xf32>, vector<32x128xf32>, vector<8x128xf32> -> vector<8x128xf32>
    %c0_67 = arith.constant 0 : index
    %c0_68 = arith.constant 0 : index
    %154 = vector.load %arg6[%c0_67, %c0_68] : memref<1x128xf32, #tpu.memory_space<vmem>>, vector<1x128xf32>
    %155 = vector.broadcast %154 : vector<1x128xf32> to vector<8x128xf32>
    %156 = arith.addf %153, %155 : vector<8x128xf32>
    %157 = arith.index_cast %130 : i32 to index
    %c0_69 = arith.constant 0 : index
    %158 = vector.load %arg9[%157, %c0_69] : memref<64x128xf32, #tpu.memory_space<vmem>>, vector<8x128xf32>
    tpu.vector_store %arg9[%157, %c0_69], %156 {strides = array<i32>} : memref<64x128xf32, #tpu.memory_space<vmem>>, vector<8x128xf32>,
    %c5_i32 = arith.constant 5 : i32
    %c8_i32_70 = arith.constant 8 : i32
    %159 = arith.muli %c5_i32, %c8_i32_70 : i32
    %160 = tpu.assume_multiple %159, 8 : i32
    %161 = arith.index_cast %160 : i32 to index
    %c0_71 = arith.constant 0 : index
    %162 = vector.load %arg12[%161, %c0_71] : memref<64x128xf32, #tpu.memory_space<vmem>>, vector<8x128xf32>
    %c0_72 = arith.constant 0 : index
    %c0_73 = arith.constant 0 : index
    %163 = vector.load %arg3[%c0_72, %c0_73] : memref<32x128xf32, #tpu.memory_space<vmem>>, vector<32x128xf32>
    %cst_74 = arith.constant dense<0.000000e+00> : vector<8x128xf32>
    %164 = tpu.matmul %151, %163, %cst_74 {dimension_numbers = #tpu.dot_dimension_numbers<[1], [0], [0], [1], [0, 0, 1, 1], [], []>} : vector<8x32xf32>, vector<32x128xf32>, vector<8x128xf32> -> vector<8x128xf32>
    %165 = arith.addf %162, %164 : vector<8x128xf32>
    %166 = vector.extract_strided_slice %165 {offsets = [0, 0], sizes = [8, 96], strides = [1, 1]} : vector<8x128xf32> to vector<8x96xf32>
    %167 = arith.negf %166 : vector<8x96xf32>
    %168 = math.exp %167 : vector<8x96xf32>
    %cst_75 = arith.constant 1.000000e+00 : f32
    %169 = vector.broadcast %cst_75 : f32 to vector<8x96xf32>
    %170 = arith.addf %169, %168 : vector<8x96xf32>
    %171 = arith.divf %169, %170 : vector<8x96xf32>
    %172 = vector.extract_strided_slice %165 {offsets = [0, 96], sizes = [8, 32], strides = [1, 1]} : vector<8x128xf32> to vector<8x32xf32>
    %173 = math.tanh %172 : vector<8x32xf32>
    %174 = vector.extract_strided_slice %171 {offsets = [0, 0], sizes = [8, 32], strides = [1, 1]} : vector<8x96xf32> to vector<8x32xf32>
    %175 = vector.extract_strided_slice %171 {offsets = [0, 32], sizes = [8, 32], strides = [1, 1]} : vector<8x96xf32> to vector<8x32xf32>
    %176 = vector.extract_strided_slice %171 {offsets = [0, 64], sizes = [8, 32], strides = [1, 1]} : vector<8x96xf32> to vector<8x32xf32>
    %177 = arith.mulf %175, %149 : vector<8x32xf32>
    %178 = arith.mulf %174, %173 : vector<8x32xf32>
    %179 = arith.addf %177, %178 : vector<8x32xf32>
    %180 = math.tanh %179 : vector<8x32xf32>
    %181 = arith.mulf %176, %180 : vector<8x32xf32>
    %c0_76 = arith.constant 0 : index
    %c0_77 = arith.constant 0 : index
    %182 = vector.load %arg5[%c0_76, %c0_77] : memref<32x128xf32, #tpu.memory_space<vmem>>, vector<32x128xf32>
    %cst_78 = arith.constant dense<0.000000e+00> : vector<8x128xf32>
    %183 = tpu.matmul %181, %182, %cst_78 {dimension_numbers = #tpu.dot_dimension_numbers<[1], [0], [0], [1], [0, 0, 1, 1], [], []>} : vector<8x32xf32>, vector<32x128xf32>, vector<8x128xf32> -> vector<8x128xf32>
    %c0_79 = arith.constant 0 : index
    %c0_80 = arith.constant 0 : index
    %184 = vector.load %arg6[%c0_79, %c0_80] : memref<1x128xf32, #tpu.memory_space<vmem>>, vector<1x128xf32>
    %185 = vector.broadcast %184 : vector<1x128xf32> to vector<8x128xf32>
    %186 = arith.addf %183, %185 : vector<8x128xf32>
    %187 = arith.index_cast %160 : i32 to index
    %c0_81 = arith.constant 0 : index
    %188 = vector.load %arg9[%187, %c0_81] : memref<64x128xf32, #tpu.memory_space<vmem>>, vector<8x128xf32>
    tpu.vector_store %arg9[%187, %c0_81], %186 {strides = array<i32>} : memref<64x128xf32, #tpu.memory_space<vmem>>, vector<8x128xf32>,
    %c6_i32 = arith.constant 6 : i32
    %c8_i32_82 = arith.constant 8 : i32
    %189 = arith.muli %c6_i32, %c8_i32_82 : i32
    %190 = tpu.assume_multiple %189, 8 : i32
    %191 = arith.index_cast %190 : i32 to index
    %c0_83 = arith.constant 0 : index
    %192 = vector.load %arg12[%191, %c0_83] : memref<64x128xf32, #tpu.memory_space<vmem>>, vector<8x128xf32>
    %c0_84 = arith.constant 0 : index
    %c0_85 = arith.constant 0 : index
    %193 = vector.load %arg3[%c0_84, %c0_85] : memref<32x128xf32, #tpu.memory_space<vmem>>, vector<32x128xf32>
    %cst_86 = arith.constant dense<0.000000e+00> : vector<8x128xf32>
    %194 = tpu.matmul %181, %193, %cst_86 {dimension_numbers = #tpu.dot_dimension_numbers<[1], [0], [0], [1], [0, 0, 1, 1], [], []>} : vector<8x32xf32>, vector<32x128xf32>, vector<8x128xf32> -> vector<8x128xf32>
    %195 = arith.addf %192, %194 : vector<8x128xf32>
    %196 = vector.extract_strided_slice %195 {offsets = [0, 0], sizes = [8, 96], strides = [1, 1]} : vector<8x128xf32> to vector<8x96xf32>
    %197 = arith.negf %196 : vector<8x96xf32>
    %198 = math.exp %197 : vector<8x96xf32>
    %cst_87 = arith.constant 1.000000e+00 : f32
    %199 = vector.broadcast %cst_87 : f32 to vector<8x96xf32>
    %200 = arith.addf %199, %198 : vector<8x96xf32>
    %201 = arith.divf %199, %200 : vector<8x96xf32>
    %202 = vector.extract_strided_slice %195 {offsets = [0, 96], sizes = [8, 32], strides = [1, 1]} : vector<8x128xf32> to vector<8x32xf32>
    %203 = math.tanh %202 : vector<8x32xf32>
    %204 = vector.extract_strided_slice %201 {offsets = [0, 0], sizes = [8, 32], strides = [1, 1]} : vector<8x96xf32> to vector<8x32xf32>
    %205 = vector.extract_strided_slice %201 {offsets = [0, 32], sizes = [8, 32], strides = [1, 1]} : vector<8x96xf32> to vector<8x32xf32>
    %206 = vector.extract_strided_slice %201 {offsets = [0, 64], sizes = [8, 32], strides = [1, 1]} : vector<8x96xf32> to vector<8x32xf32>
    %207 = arith.mulf %205, %179 : vector<8x32xf32>
    %208 = arith.mulf %204, %203 : vector<8x32xf32>
    %209 = arith.addf %207, %208 : vector<8x32xf32>
    %210 = math.tanh %209 : vector<8x32xf32>
    %211 = arith.mulf %206, %210 : vector<8x32xf32>
    %c0_88 = arith.constant 0 : index
    %c0_89 = arith.constant 0 : index
    %212 = vector.load %arg5[%c0_88, %c0_89] : memref<32x128xf32, #tpu.memory_space<vmem>>, vector<32x128xf32>
    %cst_90 = arith.constant dense<0.000000e+00> : vector<8x128xf32>
    %213 = tpu.matmul %211, %212, %cst_90 {dimension_numbers = #tpu.dot_dimension_numbers<[1], [0], [0], [1], [0, 0, 1, 1], [], []>} : vector<8x32xf32>, vector<32x128xf32>, vector<8x128xf32> -> vector<8x128xf32>
    %c0_91 = arith.constant 0 : index
    %c0_92 = arith.constant 0 : index
    %214 = vector.load %arg6[%c0_91, %c0_92] : memref<1x128xf32, #tpu.memory_space<vmem>>, vector<1x128xf32>
    %215 = vector.broadcast %214 : vector<1x128xf32> to vector<8x128xf32>
    %216 = arith.addf %213, %215 : vector<8x128xf32>
    %217 = arith.index_cast %190 : i32 to index
    %c0_93 = arith.constant 0 : index
    %218 = vector.load %arg9[%217, %c0_93] : memref<64x128xf32, #tpu.memory_space<vmem>>, vector<8x128xf32>
    tpu.vector_store %arg9[%217, %c0_93], %216 {strides = array<i32>} : memref<64x128xf32, #tpu.memory_space<vmem>>, vector<8x128xf32>,
    %c7_i32 = arith.constant 7 : i32
    %c8_i32_94 = arith.constant 8 : i32
    %219 = arith.muli %c7_i32, %c8_i32_94 : i32
    %220 = tpu.assume_multiple %219, 8 : i32
    %221 = arith.index_cast %220 : i32 to index
    %c0_95 = arith.constant 0 : index
    %222 = vector.load %arg12[%221, %c0_95] : memref<64x128xf32, #tpu.memory_space<vmem>>, vector<8x128xf32>
    %c0_96 = arith.constant 0 : index
    %c0_97 = arith.constant 0 : index
    %223 = vector.load %arg3[%c0_96, %c0_97] : memref<32x128xf32, #tpu.memory_space<vmem>>, vector<32x128xf32>
    %cst_98 = arith.constant dense<0.000000e+00> : vector<8x128xf32>
    %224 = tpu.matmul %211, %223, %cst_98 {dimension_numbers = #tpu.dot_dimension_numbers<[1], [0], [0], [1], [0, 0, 1, 1], [], []>} : vector<8x32xf32>, vector<32x128xf32>, vector<8x128xf32> -> vector<8x128xf32>
    %225 = arith.addf %222, %224 : vector<8x128xf32>
    %226 = vector.extract_strided_slice %225 {offsets = [0, 0], sizes = [8, 96], strides = [1, 1]} : vector<8x128xf32> to vector<8x96xf32>
    %227 = arith.negf %226 : vector<8x96xf32>
    %228 = math.exp %227 : vector<8x96xf32>
    %cst_99 = arith.constant 1.000000e+00 : f32
    %229 = vector.broadcast %cst_99 : f32 to vector<8x96xf32>
    %230 = arith.addf %229, %228 : vector<8x96xf32>
    %231 = arith.divf %229, %230 : vector<8x96xf32>
    %232 = vector.extract_strided_slice %225 {offsets = [0, 96], sizes = [8, 32], strides = [1, 1]} : vector<8x128xf32> to vector<8x32xf32>
    %233 = math.tanh %232 : vector<8x32xf32>
    %234 = vector.extract_strided_slice %231 {offsets = [0, 0], sizes = [8, 32], strides = [1, 1]} : vector<8x96xf32> to vector<8x32xf32>
    %235 = vector.extract_strided_slice %231 {offsets = [0, 32], sizes = [8, 32], strides = [1, 1]} : vector<8x96xf32> to vector<8x32xf32>
    %236 = vector.extract_strided_slice %231 {offsets = [0, 64], sizes = [8, 32], strides = [1, 1]} : vector<8x96xf32> to vector<8x32xf32>
    %237 = arith.mulf %235, %209 : vector<8x32xf32>
    %238 = arith.mulf %234, %233 : vector<8x32xf32>
    %239 = arith.addf %237, %238 : vector<8x32xf32>
    %240 = math.tanh %239 : vector<8x32xf32>
    %241 = arith.mulf %236, %240 : vector<8x32xf32>
    %c0_100 = arith.constant 0 : index
    %c0_101 = arith.constant 0 : index
    %242 = vector.load %arg5[%c0_100, %c0_101] : memref<32x128xf32, #tpu.memory_space<vmem>>, vector<32x128xf32>
    %cst_102 = arith.constant dense<0.000000e+00> : vector<8x128xf32>
    %243 = tpu.matmul %241, %242, %cst_102 {dimension_numbers = #tpu.dot_dimension_numbers<[1], [0], [0], [1], [0, 0, 1, 1], [], []>} : vector<8x32xf32>, vector<32x128xf32>, vector<8x128xf32> -> vector<8x128xf32>
    %c0_103 = arith.constant 0 : index
    %c0_104 = arith.constant 0 : index
    %244 = vector.load %arg6[%c0_103, %c0_104] : memref<1x128xf32, #tpu.memory_space<vmem>>, vector<1x128xf32>
    %245 = vector.broadcast %244 : vector<1x128xf32> to vector<8x128xf32>
    %246 = arith.addf %243, %245 : vector<8x128xf32>
    %247 = arith.index_cast %220 : i32 to index
    %c0_105 = arith.constant 0 : index
    %248 = vector.load %arg9[%247, %c0_105] : memref<64x128xf32, #tpu.memory_space<vmem>>, vector<8x128xf32>
    tpu.vector_store %arg9[%247, %c0_105], %246 {strides = array<i32>} : memref<64x128xf32, #tpu.memory_space<vmem>>, vector<8x128xf32>,
    %c8_i32_106 = arith.constant 8 : i32
    %c0_107 = arith.constant 0 : index
    %c0_108 = arith.constant 0 : index
    %249 = vector.load %arg10[%c0_107, %c0_108] : memref<8x32xf32, #tpu.memory_space<vmem>>, vector<8x32xf32>
    tpu.vector_store %arg10[%c0_107, %c0_108], %241 {strides = array<i32>} : memref<8x32xf32, #tpu.memory_space<vmem>>, vector<8x32xf32>,
    %c0_109 = arith.constant 0 : index
    %c0_110 = arith.constant 0 : index
    %250 = vector.load %arg11[%c0_109, %c0_110] : memref<8x32xf32, #tpu.memory_space<vmem>>, vector<8x32xf32>
    tpu.vector_store %arg11[%c0_109, %c0_110], %239 {strides = array<i32>} : memref<8x32xf32, #tpu.memory_space<vmem>>, vector<8x32xf32>,
    return
  }
  func.func @transform_0(%arg0: i32) -> (i32, i32) {
    %c0_i32 = arith.constant 0 : i32
    %c0_i32_0 = arith.constant 0 : i32
    %c0_i32_1 = arith.constant 0 : i32
    return %c0_i32, %c0_i32_0 : i32, i32
  }
  func.func @transform_1(%arg0: i32) -> (i32, i32) {
    %c0_i32 = arith.constant 0 : i32
    %c0_i32_0 = arith.constant 0 : i32
    %c0_i32_1 = arith.constant 0 : i32
    return %c0_i32, %c0_i32_0 : i32, i32
  }
  func.func @transform_2(%arg0: i32) -> (i32, i32) {
    %c0_i32 = arith.constant 0 : i32
    %c0_i32_0 = arith.constant 0 : i32
    %c0_i32_1 = arith.constant 0 : i32
    return %c0_i32, %c0_i32_0 : i32, i32
  }
  func.func @transform_3(%arg0: i32) -> (i32, i32) {
    %c0_i32 = arith.constant 0 : i32
    %c0_i32_0 = arith.constant 0 : i32
    %c0_i32_1 = arith.constant 0 : i32
    return %c0_i32, %c0_i32_0 : i32, i32
  }
  func.func @transform_4(%arg0: i32) -> (i32, i32) {
    %c0_i32 = arith.constant 0 : i32
    %c0_i32_0 = arith.constant 0 : i32
    %c0_i32_1 = arith.constant 0 : i32
    return %c0_i32, %c0_i32_0 : i32, i32
  }
  func.func @transform_5(%arg0: i32) -> (i32, i32) {
    %c0_i32 = arith.constant 0 : i32
    %c0_i32_0 = arith.constant 0 : i32
    %c0_i32_1 = arith.constant 0 : i32
    return %c0_i32, %c0_i32_0 : i32, i32
  }
  func.func @transform_6(%arg0: i32) -> (i32, i32) {
    %c0_i32 = arith.constant 0 : i32
    %c0_i32_0 = arith.constant 0 : i32
    %c0_i32_1 = arith.constant 0 : i32
    return %c0_i32, %c0_i32_0 : i32, i32
  }
  func.func @transform_7(%arg0: i32) -> (i32, i32) {
    %c0_i32 = arith.constant 0 : i32
    %c0_i32_0 = arith.constant 0 : i32
    %c0_i32_1 = arith.constant 0 : i32
    return %c0_i32, %c0_i32_0 : i32, i32
  }
  func.func @transform_8(%arg0: i32) -> (i32, i32) {
    %c0_i32 = arith.constant 0 : i32
    %c0_i32_0 = arith.constant 0 : i32
    %c0_i32_1 = arith.constant 0 : i32
    return %c0_i32, %c0_i32_0 : i32, i32
  }
  func.func @transform_9(%arg0: i32) -> (i32, i32) {
    %c0_i32 = arith.constant 0 : i32
    %c0_i32_0 = arith.constant 0 : i32
    %c0_i32_1 = arith.constant 0 : i32
    return %c0_i32, %c0_i32_0 : i32, i32
  }
  func.func @transform_10(%arg0: i32) -> (i32, i32) {
    %c0_i32 = arith.constant 0 : i32
    %c0_i32_0 = arith.constant 0 : i32
    %c0_i32_1 = arith.constant 0 : i32
    return %c0_i32, %c0_i32_0 : i32, i32
  }
}

</mosaic_0001>

<llo_original>
// kernel: tpu_custom_call.1
$region0: #{tpu_custom_call.1}
  #allocation0 [shape = 'u32[]', space=smem, size = 0x4, offset = 0x4, fixed_abs, tag = 'smem constant byte address 0x4 - core index']
  #allocation1 [shape = 'u32[144,128]{1,0:T(1,128)}', space=vmem, size = 0x12000, scoped, tag = 'internal scratch']
  #allocation2 [shape = 'f32[64,128]{1,0:T(8,128)}', space=vmem, size = 0x8000, scoped, tag = 'scratch operand']
  %s0 = inlined_call_operand.vmem [shape: f32[64,56], index: 0, kind: input, shape index: {}]
  %s1 = inlined_call_operand.vmem [shape: f32[56,128], index: 1, kind: input, shape index: {}]
  %s2 = inlined_call_operand.vmem [shape: f32[32,128], index: 2, kind: input, shape index: {}]
  %s3 = inlined_call_operand.vmem [shape: f32[1,128], index: 3, kind: input, shape index: {}]
  %s4 = inlined_call_operand.vmem [shape: f32[32,128], index: 4, kind: input, shape index: {}]
  %s5 = inlined_call_operand.vmem [shape: f32[1,128], index: 5, kind: input, shape index: {}]
  %s6 = inlined_call_operand.vmem [shape: f32[8,32], index: 6, kind: input, shape index: {}]
  %s7 = inlined_call_operand.vmem [shape: f32[8,32], index: 7, kind: input, shape index: {}]
  %s8 = inlined_call_operand.hbm [shape: f32[64,128], index: 8, kind: output, shape index: {0}]
  %s9 = inlined_call_operand.hbm [shape: f32[8,32], index: 9, kind: output, shape index: {1}]
  %s10 = inlined_call_operand.hbm [shape: f32[8,32], index: 10, kind: output, shape index: {2}]
  %11 = xla_tuple %s8, %s9, %s10
  %s12 = sld [smem:[#allocation0]]
  $region58: #{tpu_custom_call.1} parent=0
    _
  %s14 = ssub.s32 1, %s12
  %s15 = scalar_select 0, %s14, %s12
  $region1: #{tpu_custom_call.1} parent=0
    #allocation3 [shape = 'u8[32768]{0}', space=vmem, size = 0x8000, scoped, tag = 'output window, operand 0, single buffered']
    #allocation4 [shape = 's32[1]{0}', space=sflag, size = 0x4, scoped, tag = 'scoped memory for tpu_custom_call.1']
    #allocation5 [shape = 'u8[4096]{0}', space=vmem, size = 0x1000, scoped, tag = 'output window, operand 1, single buffered']
    #allocation6 [shape = 's32[1]{0}', space=sflag, size = 0x4, scoped, tag = 'scoped memory for tpu_custom_call.1']
    #allocation7 [shape = 'u8[4096]{0}', space=vmem, size = 0x1000, scoped, tag = 'output window, operand 2, single buffered']
    %16 = vsyncpa [#allocation4], 0
    %17 = vsyncpa [#allocation6], 0
    // Predicated region
    $region2: #{tpu_custom_call.1} parent=1 // pred_check
      _
    $region3: #{tpu_custom_call.1} parent=1 // pred_check_branch
      %19 = sbr.rel (0) target = $region5
    $region4: #{tpu_custom_call.1} parent=1 // pred_region
      _
    $region5: #{tpu_custom_call.1} parent=1 // pred_fallthru
      _
    // Predicated region
    $region6: #{tpu_custom_call.1} parent=1 // pred_check
      _
    $region7: #{tpu_custom_call.1} parent=1 // pred_check_branch
      %21 = sbr.rel (0) target = $region9
    $region8: #{tpu_custom_call.1} parent=1 // pred_region
      _
    $region9: #{tpu_custom_call.1} parent=1 // pred_fallthru
      _
    // Predicated region
    $region10: #{tpu_custom_call.1} parent=1 // pred_check
      _
    $region11: #{tpu_custom_call.1} parent=1 // pred_check_branch
      %23 = sbr.rel (0) target = $region13
    $region12: #{tpu_custom_call.1} parent=1 // pred_region
      _
    $region13: #{tpu_custom_call.1} parent=1 // pred_fallthru
      _
    // Predicated region
    $region14: #{tpu_custom_call.1} parent=1 // pred_check
      _
    $region15: #{tpu_custom_call.1} parent=1 // pred_check_branch
      %25 = sbr.rel (0) target = $region17
    $region16: #{tpu_custom_call.1} parent=1 // pred_region
      _
    $region17: #{tpu_custom_call.1} parent=1 // pred_fallthru
      _
    // Predicated region
    $region18: #{tpu_custom_call.1} parent=1 // pred_check
      _
    $region19: #{tpu_custom_call.1} parent=1 // pred_check_branch
      %27 = sbr.rel (0) target = $region21
    $region20: #{tpu_custom_call.1} parent=1 // pred_region
      _
    $region21: #{tpu_custom_call.1} parent=1 // pred_fallthru
      _
    // Predicated region
    $region22: #{tpu_custom_call.1} parent=1 // pred_check
      _
    $region23: #{tpu_custom_call.1} parent=1 // pred_check_branch
      %29 = sbr.rel (0) target = $region25
    $region24: #{tpu_custom_call.1} parent=1 // pred_region
      _
    $region25: #{tpu_custom_call.1} parent=1 // pred_fallthru
      _
    // Predicated region
    $region26: #{tpu_custom_call.1} parent=1 // pred_check
      _
    $region27: #{tpu_custom_call.1} parent=1 // pred_check_branch
      %31 = sbr.rel (0) target = $region29
    $region28: #{tpu_custom_call.1} parent=1 // pred_region
      _
    $region29: #{tpu_custom_call.1} parent=1 // pred_fallthru
      _
    // Predicated region
    $region30: #{tpu_custom_call.1} parent=1 // pred_check
      _
    $region31: #{tpu_custom_call.1} parent=1 // pred_check_branch
      %33 = sbr.rel (0) target = $region33
    $region32: #{tpu_custom_call.1} parent=1 // pred_region
      _
    $region33: #{tpu_custom_call.1} parent=1 // pred_fallthru
      _
    %v34 = vld [vmem:[%s0] sm:$0xff]
    %v35 = vld [vmem:[%s0 + $0x8] sm:$0xff]
    %v36 = vld [vmem:[%s0 + $0x10] sm:$0xff]
    %v37 = vld [vmem:[%s0 + $0x18] sm:$0xff]
    %v38 = vld [vmem:[%s0 + $0x20] sm:$0xff]
    %v39 = vld [vmem:[%s0 + $0x28] sm:$0xff]
    %v40 = vld [vmem:[%s0 + $0x30] sm:$0xff]
    %v41 = vld [vmem:[%s0 + $0x38] sm:$0xff]
    %v42 = vld [vmem:[%s1] sm:$0xff]
    %v43 = vld [vmem:[%s1 + $0x8] sm:$0xff]
    %v44 = vld [vmem:[%s1 + $0x10] sm:$0xff]
    %v45 = vld [vmem:[%s1 + $0x18] sm:$0xff]
    %v46 = vld [vmem:[%s1 + $0x20] sm:$0xff]
    %v47 = vld [vmem:[%s1 + $0x28] sm:$0xff]
    %v48 = vld [vmem:[%s1 + $0x30] sm:$0xff]
    %v49 = vld [vmem:[%s3] sm:$0x1]
    %v51 = vlaneseq
    %v52 = vshrl.u32 %v51, 7
    %v53 = vsub.s32 0, %v52
    %v54 = vrot.slane %v49, %v53
    %vm56 = vcmask 457728
    %v58 = vsel %vm56, %v34, 0
    %v61 = vsel %vm56, %v35, 0
    %v64 = vsel %vm56, %v36, 0
    %v67 = vsel %vm56, %v37, 0
    %v70 = vsel %vm56, %v38, 0
    %v73 = vsel %vm56, %v39, 0
    %v76 = vsel %vm56, %v40, 0
    %v79 = vsel %vm56, %v41, 0
    %81 = vmatprep.subr.mxu0 0.0
    %82 = vmatpush1.msra.mxu0 %v42
    %83 = vmatprep.subr.mxu0 0.0
    %84 = vmatpush1.msra.mxu0 %v43
    %85 = vmatprep.subr.mxu0 0.0
    %86 = vmatpush1.msra.mxu0 %v44
    %87 = vmatprep.subr.mxu0 0.0
    %88 = vmatpush1.msra.mxu0 %v45
    %89 = vmatprep.subr.mxu0 0.0
    %90 = vmatpush1.msra.mxu0 %v46
    %91 = vmatprep.subr.mxu0 0.0
    %92 = vmatpush1.msra.mxu0 %v47
    %93 = vmatprep.subr.mxu0 0.0
    %94 = vmatpush1.msra.mxu0 %v48
    %95 = vmatprep.subr.mxu0 0.0
    %96 = vmatpush1.msra.mxu0 0.0
    %97 = vmatprep.subr.mxu0 0.0
    %98 = vmatpush1.msra.mxu0 0.0
    %99 = vmatprep.subr.mxu0 0.0
    %100 = vmatpush1.msra.mxu0 0.0
    %101 = vmatprep.subr.mxu0 0.0
    %102 = vmatpush1.msra.mxu0 0.0
    %103 = vmatprep.subr.mxu0 0.0
    %104 = vmatpush1.msra.mxu0 0.0
    %105 = vmatprep.subr.mxu0 0.0
    %106 = vmatpush1.msra.mxu0 0.0
    %107 = vmatprep.subr.mxu0 0.0
    %108 = vmatpush1.msra.mxu0 0.0
    %109 = vmatprep.subr.mxu0 0.0
    %110 = vmatpush1.msra.mxu0 0.0
    %111 = vmatprep.subr.mxu0 0.0
    %112 = vmatpush1.msra.mxu0 0.0
    %113 = vmatprep.subr.mxu0 0.0
    %114 = vmatpush1.msra.mxu0 0.0
    %115 = vmatprep.subr.mxu0 0.0
    %116 = vmatpush1.msra.mxu0 0.0
    %117 = vmatprep.subr.mxu0 0.0
    %118 = vmatpush1.msra.mxu0 0.0
    %119 = vmatprep.subr.mxu0 0.0
    %120 = vmatpush1.msra.mxu0 0.0
    %121 = vmatprep.subr.mxu0 0.0
    %122 = vmatpush1.msra.mxu0 0.0
    %123 = vmatprep.subr.mxu0 0.0
    %124 = vmatpush1.msra.mxu0 0.0
    %125 = vmatprep.subr.mxu0 0.0
    %126 = vmatpush1.msra.mxu0 0.0
    %127 = vmatprep.subr.mxu0 0.0
    %128 = vmatpush1.msra.mxu0 0.0
    %129 = vmatprep.subr.mxu0 0.0
    %130 = vmatpush1.msra.mxu0 0.0
    %131 = vmatprep.subr.mxu0 0.0
    %132 = vmatpush1.msra.mxu0 0.0
    %133 = vmatprep.subr.mxu0 0.0
    %134 = vmatpush1.msra.mxu0 0.0
    %135 = vmatprep.subr.mxu0 0.0
    %136 = vmatpush1.msra.mxu0 0.0
    %137 = vmatprep.subr.mxu0 0.0
    %138 = vmatpush1.msra.mxu0 0.0
    %139 = vmatprep.subr.mxu0 0.0
    %140 = vmatpush1.msra.mxu0 0.0
    %141 = vmatprep.subr.mxu0 0.0
    %142 = vmatpush1.msra.mxu0 0.0
    %143 = vmatprep.subr.mxu0 0.0
    %144 = vmatpush1.msra.mxu0 0.0
    %145 = vmatprep.mubr.f32.mxu0 0.0
    %146 = vmatmul.mubr.f32.gmra.mrb[0].mxu0 %v58
    %v147 = vpop.f32.mrb[0].mxu0
    %v148 = vadd.f32 %v54, %v147
    %v149 = vpop.f32.mrb[0].mxu0
    %150 = vmatprep.mubr.f32.mxu0 0.0
    %151 = vmatmul.mubr.f32.gmra.mrb[0].mxu0 %v61
    %v152 = vpop.f32.mrb[0].mxu0
    %v153 = vadd.f32 %v54, %v152
    %v154 = vpop.f32.mrb[0].mxu0
    %155 = vmatprep.mubr.f32.mxu0 0.0
    %156 = vmatmul.mubr.f32.gmra.mrb[0].mxu0 %v64
    %v157 = vpop.f32.mrb[0].mxu0
    %v158 = vadd.f32 %v54, %v157
    %v159 = vpop.f32.mrb[0].mxu0
    %160 = vmatprep.mubr.f32.mxu0 0.0
    %161 = vmatmul.mubr.f32.gmra.mrb[0].mxu0 %v67
    %v162 = vpop.f32.mrb[0].mxu0
    %v163 = vadd.f32 %v54, %v162
    %v164 = vpop.f32.mrb[0].mxu0
    %165 = vmatprep.mubr.f32.mxu0 0.0
    %166 = vmatmul.mubr.f32.gmra.mrb[0].mxu0 %v70
    %v167 = vpop.f32.mrb[0].mxu0
    %v168 = vadd.f32 %v54, %v167
    %v169 = vpop.f32.mrb[0].mxu0
    %170 = vmatprep.mubr.f32.mxu0 0.0
    %171 = vmatmul.mubr.f32.gmra.mrb[0].mxu0 %v73
    %v172 = vpop.f32.mrb[0].mxu0
    %v173 = vadd.f32 %v54, %v172
    %v174 = vpop.f32.mrb[0].mxu0
    %175 = vmatprep.mubr.f32.mxu0 0.0
    %176 = vmatmul.mubr.f32.gmra.mrb[0].mxu0 %v76
    %v177 = vpop.f32.mrb[0].mxu0
    %v178 = vadd.f32 %v54, %v177
    %v179 = vpop.f32.mrb[0].mxu0
    %180 = vmatprep.mubr.f32.mxu0 0.0
    %181 = vmatmul.mubr.f32.gmra.mrb[0].mxu0 %v79
    %v182 = vpop.f32.mrb[0].mxu0
    %v183 = vadd.f32 %v54, %v182
    %v184 = vpop.f32.mrb[0].mxu0
    %185 = vdwg.mxu0
    %186 = vst [vmem:[#allocation2] sm:$0xff] %v148
    %187 = vst [vmem:[#allocation2 + $0x8] sm:$0xff] %v153
    %188 = vst [vmem:[#allocation2 + $0x10] sm:$0xff] %v158
    %189 = vst [vmem:[#allocation2 + $0x18] sm:$0xff] %v163
    %190 = vst [vmem:[#allocation2 + $0x20] sm:$0xff] %v168
    %191 = vst [vmem:[#allocation2 + $0x28] sm:$0xff] %v173
    %192 = vst [vmem:[#allocation2 + $0x30] sm:$0xff] %v178
    %193 = vst [vmem:[#allocation2 + $0x38] sm:$0xff] %v183
    %v194 = vld [vmem:[%s6] sm:$0xff]
    %v195 = vld [vmem:[%s7] sm:$0xff]
    %v196 = vld [vmem:[#allocation2] sm:$0xff]
    %v197 = vld [vmem:[%s2] sm:$0xff]
    %v198 = vld [vmem:[%s2 + $0x8] sm:$0xff]
    %v199 = vld [vmem:[%s2 + $0x10] sm:$0xff]
    %v200 = vld [vmem:[%s2 + $0x18] sm:$0xff]
    %vm201 = vcmask 261120
    %v203 = vsel %vm201, %v194, 0
    %205 = vmatprep.subr.mxu0 0.0
    %206 = vmatpush1.msra.mxu0 %v197
    %207 = vmatprep.subr.mxu0 0.0
    %208 = vmatpush1.msra.mxu0 %v198
    %209 = vmatprep.subr.mxu0 0.0
    %210 = vmatpush1.msra.mxu0 %v199
    %211 = vmatprep.subr.mxu0 0.0
    %212 = vmatpush1.msra.mxu0 %v200
    %213 = vmatprep.subr.mxu0 0.0
    %214 = vmatpush1.msra.mxu0 0.0
    %215 = vmatprep.subr.mxu0 0.0
    %216 = vmatpush1.msra.mxu0 0.0
    %217 = vmatprep.subr.mxu0 0.0
    %218 = vmatpush1.msra.mxu0 0.0
    %219 = vmatprep.subr.mxu0 0.0
    %220 = vmatpush1.msra.mxu0 0.0
    %221 = vmatprep.subr.mxu0 0.0
    %222 = vmatpush1.msra.mxu0 0.0
    %223 = vmatprep.subr.mxu0 0.0
    %224 = vmatpush1.msra.mxu0 0.0
    %225 = vmatprep.subr.mxu0 0.0
    %226 = vmatpush1.msra.mxu0 0.0
    %227 = vmatprep.subr.mxu0 0.0
    %228 = vmatpush1.msra.mxu0 0.0
    %229 = vmatprep.subr.mxu0 0.0
    %230 = vmatpush1.msra.mxu0 0.0
    %231 = vmatprep.subr.mxu0 0.0
    %232 = vmatpush1.msra.mxu0 0.0
    %233 = vmatprep.subr.mxu0 0.0
    %234 = vmatpush1.msra.mxu0 0.0
    %235 = vmatprep.subr.mxu0 0.0
    %236 = vmatpush1.msra.mxu0 0.0
    %237 = vmatprep.subr.mxu0 0.0
    %238 = vmatpush1.msra.mxu0 0.0
    %239 = vmatprep.subr.mxu0 0.0
    %240 = vmatpush1.msra.mxu0 0.0
    %241 = vmatprep.subr.mxu0 0.0
    %242 = vmatpush1.msra.mxu0 0.0
    %243 = vmatprep.subr.mxu0 0.0
    %244 = vmatpush1.msra.mxu0 0.0
    %245 = vmatprep.subr.mxu0 0.0
    %246 = vmatpush1.msra.mxu0 0.0
    %247 = vmatprep.subr.mxu0 0.0
    %248 = vmatpush1.msra.mxu0 0.0
    %249 = vmatprep.subr.mxu0 0.0
    %250 = vmatpush1.msra.mxu0 0.0
    %251 = vmatprep.subr.mxu0 0.0
    %252 = vmatpush1.msra.mxu0 0.0
    %253 = vmatprep.subr.mxu0 0.0
    %254 = vmatpush1.msra.mxu0 0.0
    %255 = vmatprep.subr.mxu0 0.0
    %256 = vmatpush1.msra.mxu0 0.0
    %257 = vmatprep.subr.mxu0 0.0
    %258 = vmatpush1.msra.mxu0 0.0
    %259 = vmatprep.subr.mxu0 0.0
    %260 = vmatpush1.msra.mxu0 0.0
    %261 = vmatprep.subr.mxu0 0.0
    %262 = vmatpush1.msra.mxu0 0.0
    %263 = vmatprep.subr.mxu0 0.0
    %264 = vmatpush1.msra.mxu0 0.0
    %265 = vmatprep.subr.mxu0 0.0
    %266 = vmatpush1.msra.mxu0 0.0
    %267 = vmatprep.subr.mxu0 0.0
    %268 = vmatpush1.msra.mxu0 0.0
    %269 = vmatprep.mubr.f32.mxu0 0.0
    %270 = vmatmul.mubr.f32.gmra.mrb[0].mxu0 %v203
    %v271 = vpop.f32.mrb[0].mxu0
    %v272 = vadd.f32 0.0, %v271
    %v273 = vpop.f32.mrb[0].mxu0
    %274 = vdwg.mxu0
    %v275 = vadd.f32 %v196, %v272
    %v276 = vxor.u32 %v275, 2147483648
    %v277 = vmul.f32 %v276, 1.442695
    %v278 = vpow.pop %v277
    %v279 = vadd.f32 %v278, 1.0
    %v280 = vrcp.pop %v279
    %v281 = vmul.f32 1.0, %v280
    %v282 = vtanh.pop %v275
    %284 = vrot.lane.b32.xlu0 %v195, 32
    %v285 = vpop.permute.xlu0 %284
    %v287 = vmul.f32 %v281, %v285
    %289 = vrot.lane.b32.xlu0 %v282, 32
    %v290 = vpop.permute.xlu0 %289
    %v292 = vmul.f32 %v281, %v290
    %294 = vrot.lane.b32.xlu0 %v292, 32
    %v295 = vpop.permute.xlu0 %294
    %v297 = vadd.f32 %v287, %v295
    %v298 = vtanh.pop %v297
    %300 = vrot.lane.b32.xlu0 %v298, 32
    %v301 = vpop.permute.xlu0 %300
    %v303 = vmul.f32 %v281, %v301
    %v304 = vld [vmem:[%s4] sm:$0xff]
    %v305 = vld [vmem:[%s4 + $0x8] sm:$0xff]
    %v306 = vld [vmem:[%s4 + $0x10] sm:$0xff]
    %v307 = vld [vmem:[%s4 + $0x18] sm:$0xff]
    %v308 = vld [vmem:[%s5] sm:$0x1]
    %v310 = vlaneseq
    %v311 = vshrl.u32 %v310, 7
    %v312 = vsub.s32 0, %v311
    %v313 = vrot.slane %v308, %v312
    %316 = vrot.lane.b32.xlu0 %v303, 64
    %v317 = vpop.permute.xlu0 %316
    %v318 = vsel %vm201, %v317, 0
    %320 = vmatprep.subr.mxu0 0.0
    %321 = vmatpush1.msra.mxu0 %v304
    %322 = vmatprep.subr.mxu0 0.0
    %323 = vmatpush1.msra.mxu0 %v305
    %324 = vmatprep.subr.mxu0 0.0
    %325 = vmatpush1.msra.mxu0 %v306
    %326 = vmatprep.subr.mxu0 0.0
    %327 = vmatpush1.msra.mxu0 %v307
    %328 = vmatprep.subr.mxu0 0.0
    %329 = vmatpush1.msra.mxu0 0.0
    %330 = vmatprep.subr.mxu0 0.0
    %331 = vmatpush1.msra.mxu0 0.0
    %332 = vmatprep.subr.mxu0 0.0
    %333 = vmatpush1.msra.mxu0 0.0
    %334 = vmatprep.subr.mxu0 0.0
    %335 = vmatpush1.msra.mxu0 0.0
    %336 = vmatprep.subr.mxu0 0.0
    %337 = vmatpush1.msra.mxu0 0.0
    %338 = vmatprep.subr.mxu0 0.0
    %339 = vmatpush1.msra.mxu0 0.0
    %340 = vmatprep.subr.mxu0 0.0
    %341 = vmatpush1.msra.mxu0 0.0
    %342 = vmatprep.subr.mxu0 0.0
    %343 = vmatpush1.msra.mxu0 0.0
    %344 = vmatprep.subr.mxu0 0.0
    %345 = vmatpush1.msra.mxu0 0.0
    %346 = vmatprep.subr.mxu0 0.0
    %347 = vmatpush1.msra.mxu0 0.0
    %348 = vmatprep.subr.mxu0 0.0
    %349 = vmatpush1.msra.mxu0 0.0
    %350 = vmatprep.subr.mxu0 0.0
    %351 = vmatpush1.msra.mxu0 0.0
    %352 = vmatprep.subr.mxu0 0.0
    %353 = vmatpush1.msra.mxu0 0.0
    %354 = vmatprep.subr.mxu0 0.0
    %355 = vmatpush1.msra.mxu0 0.0
    %356 = vmatprep.subr.mxu0 0.0
    %357 = vmatpush1.msra.mxu0 0.0
    %358 = vmatprep.subr.mxu0 0.0
    %359 = vmatpush1.msra.mxu0 0.0
    %360 = vmatprep.subr.mxu0 0.0
    %361 = vmatpush1.msra.mxu0 0.0
    %362 = vmatprep.subr.mxu0 0.0
    %363 = vmatpush1.msra.mxu0 0.0
    %364 = vmatprep.subr.mxu0 0.0
    %365 = vmatpush1.msra.mxu0 0.0
    %366 = vmatprep.subr.mxu0 0.0
    %367 = vmatpush1.msra.mxu0 0.0
    %368 = vmatprep.subr.mxu0 0.0
    %369 = vmatpush1.msra.mxu0 0.0
    %370 = vmatprep.subr.mxu0 0.0
    %371 = vmatpush1.msra.mxu0 0.0
    %372 = vmatprep.subr.mxu0 0.0
    %373 = vmatpush1.msra.mxu0 0.0
    %374 = vmatprep.subr.mxu0 0.0
    %375 = vmatpush1.msra.mxu0 0.0
    %376 = vmatprep.subr.mxu0 0.0
    %377 = vmatpush1.msra.mxu0 0.0
    %378 = vmatprep.subr.mxu0 0.0
    %379 = vmatpush1.msra.mxu0 0.0
    %380 = vmatprep.subr.mxu0 0.0
    %381 = vmatpush1.msra.mxu0 0.0
    %382 = vmatprep.subr.mxu0 0.0
    %383 = vmatpush1.msra.mxu0 0.0
    %384 = vmatprep.mubr.f32.mxu0 0.0
    %385 = vmatmul.mubr.f32.gmra.mrb[0].mxu0 %v318
    %v386 = vpop.f32.mrb[0].mxu0
    %v387 = vadd.f32 %v313, %v386
    %v388 = vpop.f32.mrb[0].mxu0
    %389 = vdwg.mxu0
    %390 = vst [vmem:[#allocation3] sm:$0xff] %v387
    %s391 = scalar_lea.vmem [#allocation2], 8
    %v392 = vld [vmem:[%s391] sm:$0xff]
    %v393 = vld [vmem:[%s2] sm:$0xff]
    %v394 = vld [vmem:[%s2 + $0x8] sm:$0xff]
    %v395 = vld [vmem:[%s2 + $0x10] sm:$0xff]
    %v396 = vld [vmem:[%s2 + $0x18] sm:$0xff]
    %397 = vmatprep.subr.mxu0 0.0
    %398 = vmatpush1.msra.mxu0 %v393
    %399 = vmatprep.subr.mxu0 0.0
    %400 = vmatpush1.msra.mxu0 %v394
    %401 = vmatprep.subr.mxu0 0.0
    %402 = vmatpush1.msra.mxu0 %v395
    %403 = vmatprep.subr.mxu0 0.0
    %404 = vmatpush1.msra.mxu0 %v396
    %405 = vmatprep.subr.mxu0 0.0
    %406 = vmatpush1.msra.mxu0 0.0
    %407 = vmatprep.subr.mxu0 0.0
    %408 = vmatpush1.msra.mxu0 0.0
    %409 = vmatprep.subr.mxu0 0.0
    %410 = vmatpush1.msra.mxu0 0.0
    %411 = vmatprep.subr.mxu0 0.0
    %412 = vmatpush1.msra.mxu0 0.0
    %413 = vmatprep.subr.mxu0 0.0
    %414 = vmatpush1.msra.mxu0 0.0
    %415 = vmatprep.subr.mxu0 0.0
    %416 = vmatpush1.msra.mxu0 0.0
    %417 = vmatprep.subr.mxu0 0.0
    %418 = vmatpush1.msra.mxu0 0.0
    %419 = vmatprep.subr.mxu0 0.0
    %420 = vmatpush1.msra.mxu0 0.0
    %421 = vmatprep.subr.mxu0 0.0
    %422 = vmatpush1.msra.mxu0 0.0
    %423 = vmatprep.subr.mxu0 0.0
    %424 = vmatpush1.msra.mxu0 0.0
    %425 = vmatprep.subr.mxu0 0.0
    %426 = vmatpush1.msra.mxu0 0.0
    %427 = vmatprep.subr.mxu0 0.0
    %428 = vmatpush1.msra.mxu0 0.0
    %429 = vmatprep.subr.mxu0 0.0
    %430 = vmatpush1.msra.mxu0 0.0
    %431 = vmatprep.subr.mxu0 0.0
    %432 = vmatpush1.msra.mxu0 0.0
    %433 = vmatprep.subr.mxu0 0.0
    %434 = vmatpush1.msra.mxu0 0.0
    %435 = vmatprep.subr.mxu0 0.0
    %436 = vmatpush1.msra.mxu0 0.0
    %437 = vmatprep.subr.mxu0 0.0
    %438 = vmatpush1.msra.mxu0 0.0
    %439 = vmatprep.subr.mxu0 0.0
    %440 = vmatpush1.msra.mxu0 0.0
    %441 = vmatprep.subr.mxu0 0.0
    %442 = vmatpush1.msra.mxu0 0.0
    %443 = vmatprep.subr.mxu0 0.0
    %444 = vmatpush1.msra.mxu0 0.0
    %445 = vmatprep.subr.mxu0 0.0
    %446 = vmatpush1.msra.mxu0 0.0
    %447 = vmatprep.subr.mxu0 0.0
    %448 = vmatpush1.msra.mxu0 0.0
    %449 = vmatprep.subr.mxu0 0.0
    %450 = vmatpush1.msra.mxu0 0.0
    %451 = vmatprep.subr.mxu0 0.0
    %452 = vmatpush1.msra.mxu0 0.0
    %453 = vmatprep.subr.mxu0 0.0
    %454 = vmatpush1.msra.mxu0 0.0
    %455 = vmatprep.subr.mxu0 0.0
    %456 = vmatpush1.msra.mxu0 0.0
    %457 = vmatprep.subr.mxu0 0.0
    %458 = vmatpush1.msra.mxu0 0.0
    %459 = vmatprep.subr.mxu0 0.0
    %460 = vmatpush1.msra.mxu0 0.0
    %461 = vmatprep.mubr.f32.mxu0 0.0
    %462 = vmatmul.mubr.f32.gmra.mrb[0].mxu0 %v318
    %v463 = vpop.f32.mrb[0].mxu0
    %v464 = vadd.f32 0.0, %v463
    %v465 = vpop.f32.mrb[0].mxu0
    %466 = vdwg.mxu0
    %v467 = vadd.f32 %v392, %v464
    %v468 = vxor.u32 %v467, 2147483648
    %v469 = vmul.f32 %v468, 1.442695
    %v470 = vpow.pop %v469
    %v471 = vadd.f32 %v470, 1.0
    %v472 = vrcp.pop %v471
    %v473 = vmul.f32 1.0, %v472
    %v474 = vtanh.pop %v467
    %v475 = vmul.f32 %v473, %v297
    %477 = vrot.lane.b32.xlu0 %v474, 32
    %v478 = vpop.permute.xlu0 %477
    %v480 = vmul.f32 %v473, %v478
    %482 = vrot.lane.b32.xlu0 %v480, 32
    %v483 = vpop.permute.xlu0 %482
    %v485 = vadd.f32 %v475, %v483
    %v486 = vtanh.pop %v485
    %488 = vrot.lane.b32.xlu0 %v486, 32
    %v489 = vpop.permute.xlu0 %488
    %v491 = vmul.f32 %v473, %v489
    %v492 = vld [vmem:[%s4] sm:$0xff]
    %v493 = vld [vmem:[%s4 + $0x8] sm:$0xff]
    %v494 = vld [vmem:[%s4 + $0x10] sm:$0xff]
    %v495 = vld [vmem:[%s4 + $0x18] sm:$0xff]
    %v496 = vld [vmem:[%s5] sm:$0x1]
    %v498 = vlaneseq
    %v499 = vshrl.u32 %v498, 7
    %v500 = vsub.s32 0, %v499
    %v501 = vrot.slane %v496, %v500
    %504 = vrot.lane.b32.xlu0 %v491, 64
    %v505 = vpop.permute.xlu0 %504
    %v506 = vsel %vm201, %v505, 0
    %508 = vmatprep.subr.mxu0 0.0
    %509 = vmatpush1.msra.mxu0 %v492
    %510 = vmatprep.subr.mxu0 0.0
    %511 = vmatpush1.msra.mxu0 %v493
    %512 = vmatprep.subr.mxu0 0.0
    %513 = vmatpush1.msra.mxu0 %v494
    %514 = vmatprep.subr.mxu0 0.0
    %515 = vmatpush1.msra.mxu0 %v495
    %516 = vmatprep.subr.mxu0 0.0
    %517 = vmatpush1.msra.mxu0 0.0
    %518 = vmatprep.subr.mxu0 0.0
    %519 = vmatpush1.msra.mxu0 0.0
    %520 = vmatprep.subr.mxu0 0.0
    %521 = vmatpush1.msra.mxu0 0.0
    %522 = vmatprep.subr.mxu0 0.0
    %523 = vmatpush1.msra.mxu0 0.0
    %524 = vmatprep.subr.mxu0 0.0
    %525 = vmatpush1.msra.mxu0 0.0
    %526 = vmatprep.subr.mxu0 0.0
    %527 = vmatpush1.msra.mxu0 0.0
    %528 = vmatprep.subr.mxu0 0.0
    %529 = vmatpush1.msra.mxu0 0.0
    %530 = vmatprep.subr.mxu0 0.0
    %531 = vmatpush1.msra.mxu0 0.0
    %532 = vmatprep.subr.mxu0 0.0
    %533 = vmatpush1.msra.mxu0 0.0
    %534 = vmatprep.subr.mxu0 0.0
    %535 = vmatpush1.msra.mxu0 0.0
    %536 = vmatprep.subr.mxu0 0.0
    %537 = vmatpush1.msra.mxu0 0.0
    %538 = vmatprep.subr.mxu0 0.0
    %539 = vmatpush1.msra.mxu0 0.0
    %540 = vmatprep.subr.mxu0 0.0
    %541 = vmatpush1.msra.mxu0 0.0
    %542 = vmatprep.subr.mxu0 0.0
    %543 = vmatpush1.msra.mxu0 0.0
    %544 = vmatprep.subr.mxu0 0.0
    %545 = vmatpush1.msra.mxu0 0.0
    %546 = vmatprep.subr.mxu0 0.0
    %547 = vmatpush1.msra.mxu0 0.0
    %548 = vmatprep.subr.mxu0 0.0
    %549 = vmatpush1.msra.mxu0 0.0
    %550 = vmatprep.subr.mxu0 0.0
    %551 = vmatpush1.msra.mxu0 0.0
    %552 = vmatprep.subr.mxu0 0.0
    %553 = vmatpush1.msra.mxu0 0.0
    %554 = vmatprep.subr.mxu0 0.0
    %555 = vmatpush1.msra.mxu0 0.0
    %556 = vmatprep.subr.mxu0 0.0
    %557 = vmatpush1.msra.mxu0 0.0
    %558 = vmatprep.subr.mxu0 0.0
    %559 = vmatpush1.msra.mxu0 0.0
    %560 = vmatprep.subr.mxu0 0.0
    %561 = vmatpush1.msra.mxu0 0.0
    %562 = vmatprep.subr.mxu0 0.0
    %563 = vmatpush1.msra.mxu0 0.0
    %564 = vmatprep.subr.mxu0 0.0
    %565 = vmatpush1.msra.mxu0 0.0
    %566 = vmatprep.subr.mxu0 0.0
    %567 = vmatpush1.msra.mxu0 0.0
    %568 = vmatprep.subr.mxu0 0.0
    %569 = vmatpush1.msra.mxu0 0.0
    %570 = vmatprep.subr.mxu0 0.0
    %571 = vmatpush1.msra.mxu0 0.0
    %572 = vmatprep.mubr.f32.mxu0 0.0
    %573 = vmatmul.mubr.f32.gmra.mrb[0].mxu0 %v506
    %v574 = vpop.f32.mrb[0].mxu0
    %v575 = vadd.f32 %v501, %v574
    %v576 = vpop.f32.mrb[0].mxu0
    %577 = vdwg.mxu0
    %s578 = scalar_lea.vmem [#allocation3], 8
    %579 = vst [vmem:[%s578] sm:$0xff] %v575
    %s580 = scalar_lea.vmem [#allocation2], 16
    %v581 = vld [vmem:[%s580] sm:$0xff]
    %v582 = vld [vmem:[%s2] sm:$0xff]
    %v583 = vld [vmem:[%s2 + $0x8] sm:$0xff]
    %v584 = vld [vmem:[%s2 + $0x10] sm:$0xff]
    %v585 = vld [vmem:[%s2 + $0x18] sm:$0xff]
    %586 = vmatprep.subr.mxu0 0.0
    %587 = vmatpush1.msra.mxu0 %v582
    %588 = vmatprep.subr.mxu0 0.0
    %589 = vmatpush1.msra.mxu0 %v583
    %590 = vmatprep.subr.mxu0 0.0
    %591 = vmatpush1.msra.mxu0 %v584
    %592 = vmatprep.subr.mxu0 0.0
    %593 = vmatpush1.msra.mxu0 %v585
    %594 = vmatprep.subr.mxu0 0.0
    %595 = vmatpush1.msra.mxu0 0.0
    %596 = vmatprep.subr.mxu0 0.0
    %597 = vmatpush1.msra.mxu0 0.0
    %598 = vmatprep.subr.mxu0 0.0
    %599 = vmatpush1.msra.mxu0 0.0
    %600 = vmatprep.subr.mxu0 0.0
    %601 = vmatpush1.msra.mxu0 0.0
    %602 = vmatprep.subr.mxu0 0.0
    %603 = vmatpush1.msra.mxu0 0.0
    %604 = vmatprep.subr.mxu0 0.0
    %605 = vmatpush1.msra.mxu0 0.0
    %606 = vmatprep.subr.mxu0 0.0
    %607 = vmatpush1.msra.mxu0 0.0
    %608 = vmatprep.subr.mxu0 0.0
    %609 = vmatpush1.msra.mxu0 0.0
    %610 = vmatprep.subr.mxu0 0.0
    %611 = vmatpush1.msra.mxu0 0.0
    %612 = vmatprep.subr.mxu0 0.0
    %613 = vmatpush1.msra.mxu0 0.0
    %614 = vmatprep.subr.mxu0 0.0
    %615 = vmatpush1.msra.mxu0 0.0
    %616 = vmatprep.subr.mxu0 0.0
    %617 = vmatpush1.msra.mxu0 0.0
    %618 = vmatprep.subr.mxu0 0.0
    %619 = vmatpush1.msra.mxu0 0.0
    %620 = vmatprep.subr.mxu0 0.0
    %621 = vmatpush1.msra.mxu0 0.0
    %622 = vmatprep.subr.mxu0 0.0
    %623 = vmatpush1.msra.mxu0 0.0
    %624 = vmatprep.subr.mxu0 0.0
    %625 = vmatpush1.msra.mxu0 0.0
    %626 = vmatprep.subr.mxu0 0.0
    %627 = vmatpush1.msra.mxu0 0.0
    %628 = vmatprep.subr.mxu0 0.0
    %629 = vmatpush1.msra.mxu0 0.0
    %630 = vmatprep.subr.mxu0 0.0
    %631 = vmatpush1.msra.mxu0 0.0
    %632 = vmatprep.subr.mxu0 0.0
    %633 = vmatpush1.msra.mxu0 0.0
    %634 = vmatprep.subr.mxu0 0.0
    %635 = vmatpush1.msra.mxu0 0.0
    %636 = vmatprep.subr.mxu0 0.0
    %637 = vmatpush1.msra.mxu0 0.0
    %638 = vmatprep.subr.mxu0 0.0
    %639 = vmatpush1.msra.mxu0 0.0
    %640 = vmatprep.subr.mxu0 0.0
    %641 = vmatpush1.msra.mxu0 0.0
    %642 = vmatprep.subr.mxu0 0.0
    %643 = vmatpush1.msra.mxu0 0.0
    %644 = vmatprep.subr.mxu0 0.0
    %645 = vmatpush1.msra.mxu0 0.0
    %646 = vmatprep.subr.mxu0 0.0
    %647 = vmatpush1.msra.mxu0 0.0
    %648 = vmatprep.subr.mxu0 0.0
    %649 = vmatpush1.msra.mxu0 0.0
    %650 = vmatprep.mubr.f32.mxu0 0.0
    %651 = vmatmul.mubr.f32.gmra.mrb[0].mxu0 %v506
    %v652 = vpop.f32.mrb[0].mxu0
    %v653 = vadd.f32 0.0, %v652
    %v654 = vpop.f32.mrb[0].mxu0
    %655 = vdwg.mxu0
    %v656 = vadd.f32 %v581, %v653
    %v657 = vxor.u32 %v656, 2147483648
    %v658 = vmul.f32 %v657, 1.442695
    %v659 = vpow.pop %v658
    %v660 = vadd.f32 %v659, 1.0
    %v661 = vrcp.pop %v660
    %v662 = vmul.f32 1.0, %v661
    %v663 = vtanh.pop %v656
    %v664 = vmul.f32 %v662, %v485
    %666 = vrot.lane.b32.xlu0 %v663, 32
    %v667 = vpop.permute.xlu0 %666
    %v669 = vmul.f32 %v662, %v667
    %671 = vrot.lane.b32.xlu0 %v669, 32
    %v672 = vpop.permute.xlu0 %671
    %v674 = vadd.f32 %v664, %v672
    %v675 = vtanh.pop %v674
    %677 = vrot.lane.b32.xlu0 %v675, 32
    %v678 = vpop.permute.xlu0 %677
    %v680 = vmul.f32 %v662, %v678
    %v681 = vld [vmem:[%s4] sm:$0xff]
    %v682 = vld [vmem:[%s4 + $0x8] sm:$0xff]
    %v683 = vld [vmem:[%s4 + $0x10] sm:$0xff]
    %v684 = vld [vmem:[%s4 + $0x18] sm:$0xff]
    %v685 = vld [vmem:[%s5] sm:$0x1]
    %v687 = vlaneseq
    %v688 = vshrl.u32 %v687, 7
    %v689 = vsub.s32 0, %v688
    %v690 = vrot.slane %v685, %v689
    %693 = vrot.lane.b32.xlu0 %v680, 64
    %v694 = vpop.permute.xlu0 %693
    %v695 = vsel %vm201, %v694, 0
    %697 = vmatprep.subr.mxu0 0.0
    %698 = vmatpush1.msra.mxu0 %v681
    %699 = vmatprep.subr.mxu0 0.0
    %700 = vmatpush1.msra.mxu0 %v682
    %701 = vmatprep.subr.mxu0 0.0
    %702 = vmatpush1.msra.mxu0 %v683
    %703 = vmatprep.subr.mxu0 0.0
    %704 = vmatpush1.msra.mxu0 %v684
    %705 = vmatprep.subr.mxu0 0.0
    %706 = vmatpush1.msra.mxu0 0.0
    %707 = vmatprep.subr.mxu0 0.0
    %708 = vmatpush1.msra.mxu0 0.0
    %709 = vmatprep.subr.mxu0 0.0
    %710 = vmatpush1.msra.mxu0 0.0
    %711 = vmatprep.subr.mxu0 0.0
    %712 = vmatpush1.msra.mxu0 0.0
    %713 = vmatprep.subr.mxu0 0.0
    %714 = vmatpush1.msra.mxu0 0.0
    %715 = vmatprep.subr.mxu0 0.0
    %716 = vmatpush1.msra.mxu0 0.0
    %717 = vmatprep.subr.mxu0 0.0
    %718 = vmatpush1.msra.mxu0 0.0
    %719 = vmatprep.subr.mxu0 0.0
    %720 = vmatpush1.msra.mxu0 0.0
    %721 = vmatprep.subr.mxu0 0.0
    %722 = vmatpush1.msra.mxu0 0.0
    %723 = vmatprep.subr.mxu0 0.0
    %724 = vmatpush1.msra.mxu0 0.0
    %725 = vmatprep.subr.mxu0 0.0
    %726 = vmatpush1.msra.mxu0 0.0
    %727 = vmatprep.subr.mxu0 0.0
    %728 = vmatpush1.msra.mxu0 0.0
    %729 = vmatprep.subr.mxu0 0.0
    %730 = vmatpush1.msra.mxu0 0.0
    %731 = vmatprep.subr.mxu0 0.0
    %732 = vmatpush1.msra.mxu0 0.0
    %733 = vmatprep.subr.mxu0 0.0
    %734 = vmatpush1.msra.mxu0 0.0
    %735 = vmatprep.subr.mxu0 0.0
    %736 = vmatpush1.msra.mxu0 0.0
    %737 = vmatprep.subr.mxu0 0.0
    %738 = vmatpush1.msra.mxu0 0.0
    %739 = vmatprep.subr.mxu0 0.0
    %740 = vmatpush1.msra.mxu0 0.0
    %741 = vmatprep.subr.mxu0 0.0
    %742 = vmatpush1.msra.mxu0 0.0
    %743 = vmatprep.subr.mxu0 0.0
    %744 = vmatpush1.msra.mxu0 0.0
    %745 = vmatprep.subr.mxu0 0.0
    %746 = vmatpush1.msra.mxu0 0.0
    %747 = vmatprep.subr.mxu0 0.0
    %748 = vmatpush1.msra.mxu0 0.0
    %749 = vmatprep.subr.mxu0 0.0
    %750 = vmatpush1.msra.mxu0 0.0
    %751 = vmatprep.subr.mxu0 0.0
    %752 = vmatpush1.msra.mxu0 0.0
    %753 = vmatprep.subr.mxu0 0.0
    %754 = vmatpush1.msra.mxu0 0.0
    %755 = vmatprep.subr.mxu0 0.0
    %756 = vmatpush1.msra.mxu0 0.0
    %757 = vmatprep.subr.mxu0 0.0
    %758 = vmatpush1.msra.mxu0 0.0
    %759 = vmatprep.subr.mxu0 0.0
    %760 = vmatpush1.msra.mxu0 0.0
    %761 = vmatprep.mubr.f32.mxu0 0.0
    %762 = vmatmul.mubr.f32.gmra.mrb[0].mxu0 %v695
    %v763 = vpop.f32.mrb[0].mxu0
    %v764 = vadd.f32 %v690, %v763
    %v765 = vpop.f32.mrb[0].mxu0
    %766 = vdwg.mxu0
    %s767 = scalar_lea.vmem [#allocation3], 16
    %768 = vst [vmem:[%s767] sm:$0xff] %v764
    %s769 = scalar_lea.vmem [#allocation2], 24
    %v770 = vld [vmem:[%s769] sm:$0xff]
    %v771 = vld [vmem:[%s2] sm:$0xff]
    %v772 = vld [vmem:[%s2 + $0x8] sm:$0xff]
    %v773 = vld [vmem:[%s2 + $0x10] sm:$0xff]
    %v774 = vld [vmem:[%s2 + $0x18] sm:$0xff]
    %775 = vmatprep.subr.mxu0 0.0
    %776 = vmatpush1.msra.mxu0 %v771
    %777 = vmatprep.subr.mxu0 0.0
    %778 = vmatpush1.msra.mxu0 %v772
    %779 = vmatprep.subr.mxu0 0.0
    %780 = vmatpush1.msra.mxu0 %v773
    %781 = vmatprep.subr.mxu0 0.0
    %782 = vmatpush1.msra.mxu0 %v774
    %783 = vmatprep.subr.mxu0 0.0
    %784 = vmatpush1.msra.mxu0 0.0
    %785 = vmatprep.subr.mxu0 0.0
    %786 = vmatpush1.msra.mxu0 0.0
    %787 = vmatprep.subr.mxu0 0.0
    %788 = vmatpush1.msra.mxu0 0.0
    %789 = vmatprep.subr.mxu0 0.0
    %790 = vmatpush1.msra.mxu0 0.0
    %791 = vmatprep.subr.mxu0 0.0
    %792 = vmatpush1.msra.mxu0 0.0
    %793 = vmatprep.subr.mxu0 0.0
    %794 = vmatpush1.msra.mxu0 0.0
    %795 = vmatprep.subr.mxu0 0.0
    %796 = vmatpush1.msra.mxu0 0.0
    %797 = vmatprep.subr.mxu0 0.0
    %798 = vmatpush1.msra.mxu0 0.0
    %799 = vmatprep.subr.mxu0 0.0
    %800 = vmatpush1.msra.mxu0 0.0
    %801 = vmatprep.subr.mxu0 0.0
    %802 = vmatpush1.msra.mxu0 0.0
    %803 = vmatprep.subr.mxu0 0.0
    %804 = vmatpush1.msra.mxu0 0.0
    %805 = vmatprep.subr.mxu0 0.0
    %806 = vmatpush1.msra.mxu0 0.0
    %807 = vmatprep.subr.mxu0 0.0
    %808 = vmatpush1.msra.mxu0 0.0
    %809 = vmatprep.subr.mxu0 0.0
    %810 = vmatpush1.msra.mxu0 0.0
    %811 = vmatprep.subr.mxu0 0.0
    %812 = vmatpush1.msra.mxu0 0.0
    %813 = vmatprep.subr.mxu0 0.0
    %814 = vmatpush1.msra.mxu0 0.0
    %815 = vmatprep.subr.mxu0 0.0
    %816 = vmatpush1.msra.mxu0 0.0
    %817 = vmatprep.subr.mxu0 0.0
    %818 = vmatpush1.msra.mxu0 0.0
    %819 = vmatprep.subr.mxu0 0.0
    %820 = vmatpush1.msra.mxu0 0.0
    %821 = vmatprep.subr.mxu0 0.0
    %822 = vmatpush1.msra.mxu0 0.0
    %823 = vmatprep.subr.mxu0 0.0
    %824 = vmatpush1.msra.mxu0 0.0
    %825 = vmatprep.subr.mxu0 0.0
    %826 = vmatpush1.msra.mxu0 0.0
    %827 = vmatprep.subr.mxu0 0.0
    %828 = vmatpush1.msra.mxu0 0.0
    %829 = vmatprep.subr.mxu0 0.0
    %830 = vmatpush1.msra.mxu0 0.0
    %831 = vmatprep.subr.mxu0 0.0
    %832 = vmatpush1.msra.mxu0 0.0
    %833 = vmatprep.subr.mxu0 0.0
    %834 = vmatpush1.msra.mxu0 0.0
    %835 = vmatprep.subr.mxu0 0.0
    %836 = vmatpush1.msra.mxu0 0.0
    %837 = vmatprep.subr.mxu0 0.0
    %838 = vmatpush1.msra.mxu0 0.0
    %839 = vmatprep.mubr.f32.mxu0 0.0
    %840 = vmatmul.mubr.f32.gmra.mrb[0].mxu0 %v695
    %v841 = vpop.f32.mrb[0].mxu0
    %v842 = vadd.f32 0.0, %v841
    %v843 = vpop.f32.mrb[0].mxu0
    %844 = vdwg.mxu0
    %v845 = vadd.f32 %v770, %v842
    %v846 = vxor.u32 %v845, 2147483648
    %v847 = vmul.f32 %v846, 1.442695
    %v848 = vpow.pop %v847
    %v849 = vadd.f32 %v848, 1.0
    %v850 = vrcp.pop %v849
    %v851 = vmul.f32 1.0, %v850
    %v852 = vtanh.pop %v845
    %v853 = vmul.f32 %v851, %v674
    %855 = vrot.lane.b32.xlu0 %v852, 32
    %v856 = vpop.permute.xlu0 %855
    %v858 = vmul.f32 %v851, %v856
    %860 = vrot.lane.b32.xlu0 %v858, 32
    %v861 = vpop.permute.xlu0 %860
    %v863 = vadd.f32 %v853, %v861
    %v864 = vtanh.pop %v863
    %866 = vrot.lane.b32.xlu0 %v864, 32
    %v867 = vpop.permute.xlu0 %866
    %v869 = vmul.f32 %v851, %v867
    %v870 = vld [vmem:[%s4] sm:$0xff]
    %v871 = vld [vmem:[%s4 + $0x8] sm:$0xff]
    %v872 = vld [vmem:[%s4 + $0x10] sm:$0xff]
    %v873 = vld [vmem:[%s4 + $0x18] sm:$0xff]
    %v874 = vld [vmem:[%s5] sm:$0x1]
    %v876 = vlaneseq
    %v877 = vshrl.u32 %v876, 7
    %v878 = vsub.s32 0, %v877
    %v879 = vrot.slane %v874, %v878
    %882 = vrot.lane.b32.xlu0 %v869, 64
    %v883 = vpop.permute.xlu0 %882
    %v884 = vsel %vm201, %v883, 0
    %886 = vmatprep.subr.mxu0 0.0
    %887 = vmatpush1.msra.mxu0 %v870
    %888 = vmatprep.subr.mxu0 0.0
    %889 = vmatpush1.msra.mxu0 %v871
    %890 = vmatprep.subr.mxu0 0.0
    %891 = vmatpush1.msra.mxu0 %v872
    %892 = vmatprep.subr.mxu0 0.0
    %893 = vmatpush1.msra.mxu0 %v873
    %894 = vmatprep.subr.mxu0 0.0
    %895 = vmatpush1.msra.mxu0 0.0
    %896 = vmatprep.subr.mxu0 0.0
    %897 = vmatpush1.msra.mxu0 0.0
    %898 = vmatprep.subr.mxu0 0.0
    %899 = vmatpush1.msra.mxu0 0.0
    %900 = vmatprep.subr.mxu0 0.0
    %901 = vmatpush1.msra.mxu0 0.0
    %902 = vmatprep.subr.mxu0 0.0
    %903 = vmatpush1.msra.mxu0 0.0
    %904 = vmatprep.subr.mxu0 0.0
    %905 = vmatpush1.msra.mxu0 0.0
    %906 = vmatprep.subr.mxu0 0.0
    %907 = vmatpush1.msra.mxu0 0.0
    %908 = vmatprep.subr.mxu0 0.0
    %909 = vmatpush1.msra.mxu0 0.0
    %910 = vmatprep.subr.mxu0 0.0
    %911 = vmatpush1.msra.mxu0 0.0
    %912 = vmatprep.subr.mxu0 0.0
    %913 = vmatpush1.msra.mxu0 0.0
    %914 = vmatprep.subr.mxu0 0.0
    %915 = vmatpush1.msra.mxu0 0.0
    %916 = vmatprep.subr.mxu0 0.0
    %917 = vmatpush1.msra.mxu0 0.0
    %918 = vmatprep.subr.mxu0 0.0
    %919 = vmatpush1.msra.mxu0 0.0
    %920 = vmatprep.subr.mxu0 0.0
    %921 = vmatpush1.msra.mxu0 0.0
    %922 = vmatprep.subr.mxu0 0.0
    %923 = vmatpush1.msra.mxu0 0.0
    %924 = vmatprep.subr.mxu0 0.0
    %925 = vmatpush1.msra.mxu0 0.0
    %926 = vmatprep.subr.mxu0 0.0
    %927 = vmatpush1.msra.mxu0 0.0
    %928 = vmatprep.subr.mxu0 0.0
    %929 = vmatpush1.msra.mxu0 0.0
    %930 = vmatprep.subr.mxu0 0.0
    %931 = vmatpush1.msra.mxu0 0.0
    %932 = vmatprep.subr.mxu0 0.0
    %933 = vmatpush1.msra.mxu0 0.0
    %934 = vmatprep.subr.mxu0 0.0
    %935 = vmatpush1.msra.mxu0 0.0
    %936 = vmatprep.subr.mxu0 0.0
    %937 = vmatpush1.msra.mxu0 0.0
    %938 = vmatprep.subr.mxu0 0.0
    %939 = vmatpush1.msra.mxu0 0.0
    %940 = vmatprep.subr.mxu0 0.0
    %941 = vmatpush1.msra.mxu0 0.0
    %942 = vmatprep.subr.mxu0 0.0
    %943 = vmatpush1.msra.mxu0 0.0
    %944 = vmatprep.subr.mxu0 0.0
    %945 = vmatpush1.msra.mxu0 0.0
    %946 = vmatprep.subr.mxu0 0.0
    %947 = vmatpush1.msra.mxu0 0.0
    %948 = vmatprep.subr.mxu0 0.0
    %949 = vmatpush1.msra.mxu0 0.0
    %950 = vmatprep.mubr.f32.mxu0 0.0
    %951 = vmatmul.mubr.f32.gmra.mrb[0].mxu0 %v884
    %v952 = vpop.f32.mrb[0].mxu0
    %v953 = vadd.f32 %v879, %v952
    %v954 = vpop.f32.mrb[0].mxu0
    %955 = vdwg.mxu0
    %s956 = scalar_lea.vmem [#allocation3], 24
    %957 = vst [vmem:[%s956] sm:$0xff] %v953
    %s958 = scalar_lea.vmem [#allocation2], 32
    %v959 = vld [vmem:[%s958] sm:$0xff]
    %v960 = vld [vmem:[%s2] sm:$0xff]
    %v961 = vld [vmem:[%s2 + $0x8] sm:$0xff]
    %v962 = vld [vmem:[%s2 + $0x10] sm:$0xff]
    %v963 = vld [vmem:[%s2 + $0x18] sm:$0xff]
    %964 = vmatprep.subr.mxu0 0.0
    %965 = vmatpush1.msra.mxu0 %v960
    %966 = vmatprep.subr.mxu0 0.0
    %967 = vmatpush1.msra.mxu0 %v961
    %968 = vmatprep.subr.mxu0 0.0
    %969 = vmatpush1.msra.mxu0 %v962
    %970 = vmatprep.subr.mxu0 0.0
    %971 = vmatpush1.msra.mxu0 %v963
    %972 = vmatprep.subr.mxu0 0.0
    %973 = vmatpush1.msra.mxu0 0.0
    %974 = vmatprep.subr.mxu0 0.0
    %975 = vmatpush1.msra.mxu0 0.0
    %976 = vmatprep.subr.mxu0 0.0
    %977 = vmatpush1.msra.mxu0 0.0
    %978 = vmatprep.subr.mxu0 0.0
    %979 = vmatpush1.msra.mxu0 0.0
    %980 = vmatprep.subr.mxu0 0.0
    %981 = vmatpush1.msra.mxu0 0.0
    %982 = vmatprep.subr.mxu0 0.0
    %983 = vmatpush1.msra.mxu0 0.0
    %984 = vmatprep.subr.mxu0 0.0
    %985 = vmatpush1.msra.mxu0 0.0
    %986 = vmatprep.subr.mxu0 0.0
    %987 = vmatpush1.msra.mxu0 0.0
    %988 = vmatprep.subr.mxu0 0.0
    %989 = vmatpush1.msra.mxu0 0.0
    %990 = vmatprep.subr.mxu0 0.0
    %991 = vmatpush1.msra.mxu0 0.0
    %992 = vmatprep.subr.mxu0 0.0
    %993 = vmatpush1.msra.mxu0 0.0
    %994 = vmatprep.subr.mxu0 0.0
    %995 = vmatpush1.msra.mxu0 0.0
    %996 = vmatprep.subr.mxu0 0.0
    %997 = vmatpush1.msra.mxu0 0.0
    %998 = vmatprep.subr.mxu0 0.0
    %999 = vmatpush1.msra.mxu0 0.0
    %1000 = vmatprep.subr.mxu0 0.0
    %1001 = vmatpush1.msra.mxu0 0.0
    %1002 = vmatprep.subr.mxu0 0.0
    %1003 = vmatpush1.msra.mxu0 0.0
    %1004 = vmatprep.subr.mxu0 0.0
    %1005 = vmatpush1.msra.mxu0 0.0
    %1006 = vmatprep.subr.mxu0 0.0
    %1007 = vmatpush1.msra.mxu0 0.0
    %1008 = vmatprep.subr.mxu0 0.0
    %1009 = vmatpush1.msra.mxu0 0.0
    %1010 = vmatprep.subr.mxu0 0.0
    %1011 = vmatpush1.msra.mxu0 0.0
    %1012 = vmatprep.subr.mxu0 0.0
    %1013 = vmatpush1.msra.mxu0 0.0
    %1014 = vmatprep.subr.mxu0 0.0
    %1015 = vmatpush1.msra.mxu0 0.0
    %1016 = vmatprep.subr.mxu0 0.0
    %1017 = vmatpush1.msra.mxu0 0.0
    %1018 = vmatprep.subr.mxu0 0.0
    %1019 = vmatpush1.msra.mxu0 0.0
    %1020 = vmatprep.subr.mxu0 0.0
    %1021 = vmatpush1.msra.mxu0 0.0
    %1022 = vmatprep.subr.mxu0 0.0
    %1023 = vmatpush1.msra.mxu0 0.0
    %1024 = vmatprep.subr.mxu0 0.0
    %1025 = vmatpush1.msra.mxu0 0.0
    %1026 = vmatprep.subr.mxu0 0.0
    %1027 = vmatpush1.msra.mxu0 0.0
    %1028 = vmatprep.mubr.f32.mxu0 0.0
    %1029 = vmatmul.mubr.f32.gmra.mrb[0].mxu0 %v884
    %v1030 = vpop.f32.mrb[0].mxu0
    %v1031 = vadd.f32 0.0, %v1030
    %v1032 = vpop.f32.mrb[0].mxu0
    %1033 = vdwg.mxu0
    %v1034 = vadd.f32 %v959, %v1031
    %v1035 = vxor.u32 %v1034, 2147483648
    %v1036 = vmul.f32 %v1035, 1.442695
    %v1037 = vpow.pop %v1036
    %v1038 = vadd.f32 %v1037, 1.0
    %v1039 = vrcp.pop %v1038
    %v1040 = vmul.f32 1.0, %v1039
    %v1041 = vtanh.pop %v1034
    %v1042 = vmul.f32 %v1040, %v863
    %1044 = vrot.lane.b32.xlu0 %v1041, 32
    %v1045 = vpop.permute.xlu0 %1044
    %v1047 = vmul.f32 %v1040, %v1045
    %1049 = vrot.lane.b32.xlu0 %v1047, 32
    %v1050 = vpop.permute.xlu0 %1049
    %v1052 = vadd.f32 %v1042, %v1050
    %v1053 = vtanh.pop %v1052
    %1055 = vrot.lane.b32.xlu0 %v1053, 32
    %v1056 = vpop.permute.xlu0 %1055
    %v1058 = vmul.f32 %v1040, %v1056
    %v1059 = vld [vmem:[%s4] sm:$0xff]
    %v1060 = vld [vmem:[%s4 + $0x8] sm:$0xff]
    %v1061 = vld [vmem:[%s4 + $0x10] sm:$0xff]
    %v1062 = vld [vmem:[%s4 + $0x18] sm:$0xff]
    %v1063 = vld [vmem:[%s5] sm:$0x1]
    %v1065 = vlaneseq
    %v1066 = vshrl.u32 %v1065, 7
    %v1067 = vsub.s32 0, %v1066
    %v1068 = vrot.slane %v1063, %v1067
    %1071 = vrot.lane.b32.xlu0 %v1058, 64
    %v1072 = vpop.permute.xlu0 %1071
    %v1073 = vsel %vm201, %v1072, 0
    %1075 = vmatprep.subr.mxu0 0.0
    %1076 = vmatpush1.msra.mxu0 %v1059
    %1077 = vmatprep.subr.mxu0 0.0
    %1078 = vmatpush1.msra.mxu0 %v1060
    %1079 = vmatprep.subr.mxu0 0.0
    %1080 = vmatpush1.msra.mxu0 %v1061
    %1081 = vmatprep.subr.mxu0 0.0
    %1082 = vmatpush1.msra.mxu0 %v1062
    %1083 = vmatprep.subr.mxu0 0.0
    %1084 = vmatpush1.msra.mxu0 0.0
    %1085 = vmatprep.subr.mxu0 0.0
    %1086 = vmatpush1.msra.mxu0 0.0
    %1087 = vmatprep.subr.mxu0 0.0
    %1088 = vmatpush1.msra.mxu0 0.0
    %1089 = vmatprep.subr.mxu0 0.0
    %1090 = vmatpush1.msra.mxu0 0.0
    %1091 = vmatprep.subr.mxu0 0.0
    %1092 = vmatpush1.msra.mxu0 0.0
    %1093 = vmatprep.subr.mxu0 0.0
    %1094 = vmatpush1.msra.mxu0 0.0
    %1095 = vmatprep.subr.mxu0 0.0
    %1096 = vmatpush1.msra.mxu0 0.0
    %1097 = vmatprep.subr.mxu0 0.0
    %1098 = vmatpush1.msra.mxu0 0.0
    %1099 = vmatprep.subr.mxu0 0.0
    %1100 = vmatpush1.msra.mxu0 0.0
    %1101 = vmatprep.subr.mxu0 0.0
    %1102 = vmatpush1.msra.mxu0 0.0
    %1103 = vmatprep.subr.mxu0 0.0
    %1104 = vmatpush1.msra.mxu0 0.0
    %1105 = vmatprep.subr.mxu0 0.0
    %1106 = vmatpush1.msra.mxu0 0.0
    %1107 = vmatprep.subr.mxu0 0.0
    %1108 = vmatpush1.msra.mxu0 0.0
    %1109 = vmatprep.subr.mxu0 0.0
    %1110 = vmatpush1.msra.mxu0 0.0
    %1111 = vmatprep.subr.mxu0 0.0
    %1112 = vmatpush1.msra.mxu0 0.0
    %1113 = vmatprep.subr.mxu0 0.0
    %1114 = vmatpush1.msra.mxu0 0.0
    %1115 = vmatprep.subr.mxu0 0.0
    %1116 = vmatpush1.msra.mxu0 0.0
    %1117 = vmatprep.subr.mxu0 0.0
    %1118 = vmatpush1.msra.mxu0 0.0
    %1119 = vmatprep.subr.mxu0 0.0
    %1120 = vmatpush1.msra.mxu0 0.0
    %1121 = vmatprep.subr.mxu0 0.0
    %1122 = vmatpush1.msra.mxu0 0.0
    %1123 = vmatprep.subr.mxu0 0.0
    %1124 = vmatpush1.msra.mxu0 0.0
    %1125 = vmatprep.subr.mxu0 0.0
    %1126 = vmatpush1.msra.mxu0 0.0
    %1127 = vmatprep.subr.mxu0 0.0
    %1128 = vmatpush1.msra.mxu0 0.0
    %1129 = vmatprep.subr.mxu0 0.0
    %1130 = vmatpush1.msra.mxu0 0.0
    %1131 = vmatprep.subr.mxu0 0.0
    %1132 = vmatpush1.msra.mxu0 0.0
    %1133 = vmatprep.subr.mxu0 0.0
    %1134 = vmatpush1.msra.mxu0 0.0
    %1135 = vmatprep.subr.mxu0 0.0
    %1136 = vmatpush1.msra.mxu0 0.0
    %1137 = vmatprep.subr.mxu0 0.0
    %1138 = vmatpush1.msra.mxu0 0.0
    %1139 = vmatprep.mubr.f32.mxu0 0.0
    %1140 = vmatmul.mubr.f32.gmra.mrb[0].mxu0 %v1073
    %v1141 = vpop.f32.mrb[0].mxu0
    %v1142 = vadd.f32 %v1068, %v1141
    %v1143 = vpop.f32.mrb[0].mxu0
    %1144 = vdwg.mxu0
    %s1145 = scalar_lea.vmem [#allocation3], 32
    %1146 = vst [vmem:[%s1145] sm:$0xff] %v1142
    %s1147 = scalar_lea.vmem [#allocation2], 40
    %v1148 = vld [vmem:[%s1147] sm:$0xff]
    %v1149 = vld [vmem:[%s2] sm:$0xff]
    %v1150 = vld [vmem:[%s2 + $0x8] sm:$0xff]
    %v1151 = vld [vmem:[%s2 + $0x10] sm:$0xff]
    %v1152 = vld [vmem:[%s2 + $0x18] sm:$0xff]
    %1153 = vmatprep.subr.mxu0 0.0
    %1154 = vmatpush1.msra.mxu0 %v1149
    %1155 = vmatprep.subr.mxu0 0.0
    %1156 = vmatpush1.msra.mxu0 %v1150
    %1157 = vmatprep.subr.mxu0 0.0
    %1158 = vmatpush1.msra.mxu0 %v1151
    %1159 = vmatprep.subr.mxu0 0.0
    %1160 = vmatpush1.msra.mxu0 %v1152
    %1161 = vmatprep.subr.mxu0 0.0
    %1162 = vmatpush1.msra.mxu0 0.0
    %1163 = vmatprep.subr.mxu0 0.0
    %1164 = vmatpush1.msra.mxu0 0.0
    %1165 = vmatprep.subr.mxu0 0.0
    %1166 = vmatpush1.msra.mxu0 0.0
    %1167 = vmatprep.subr.mxu0 0.0
    %1168 = vmatpush1.msra.mxu0 0.0
    %1169 = vmatprep.subr.mxu0 0.0
    %1170 = vmatpush1.msra.mxu0 0.0
    %1171 = vmatprep.subr.mxu0 0.0
    %1172 = vmatpush1.msra.mxu0 0.0
    %1173 = vmatprep.subr.mxu0 0.0
    %1174 = vmatpush1.msra.mxu0 0.0
    %1175 = vmatprep.subr.mxu0 0.0
    %1176 = vmatpush1.msra.mxu0 0.0
    %1177 = vmatprep.subr.mxu0 0.0
    %1178 = vmatpush1.msra.mxu0 0.0
    %1179 = vmatprep.subr.mxu0 0.0
    %1180 = vmatpush1.msra.mxu0 0.0
    %1181 = vmatprep.subr.mxu0 0.0
    %1182 = vmatpush1.msra.mxu0 0.0
    %1183 = vmatprep.subr.mxu0 0.0
    %1184 = vmatpush1.msra.mxu0 0.0
    %1185 = vmatprep.subr.mxu0 0.0
    %1186 = vmatpush1.msra.mxu0 0.0
    %1187 = vmatprep.subr.mxu0 0.0
    %1188 = vmatpush1.msra.mxu0 0.0
    %1189 = vmatprep.subr.mxu0 0.0
    %1190 = vmatpush1.msra.mxu0 0.0
    %1191 = vmatprep.subr.mxu0 0.0
    %1192 = vmatpush1.msra.mxu0 0.0
    %1193 = vmatprep.subr.mxu0 0.0
    %1194 = vmatpush1.msra.mxu0 0.0
    %1195 = vmatprep.subr.mxu0 0.0
    %1196 = vmatpush1.msra.mxu0 0.0
    %1197 = vmatprep.subr.mxu0 0.0
    %1198 = vmatpush1.msra.mxu0 0.0
    %1199 = vmatprep.subr.mxu0 0.0
    %1200 = vmatpush1.msra.mxu0 0.0
    %1201 = vmatprep.subr.mxu0 0.0
    %1202 = vmatpush1.msra.mxu0 0.0
    %1203 = vmatprep.subr.mxu0 0.0
    %1204 = vmatpush1.msra.mxu0 0.0
    %1205 = vmatprep.subr.mxu0 0.0
    %1206 = vmatpush1.msra.mxu0 0.0
    %1207 = vmatprep.subr.mxu0 0.0
    %1208 = vmatpush1.msra.mxu0 0.0
    %1209 = vmatprep.subr.mxu0 0.0
    %1210 = vmatpush1.msra.mxu0 0.0
    %1211 = vmatprep.subr.mxu0 0.0
    %1212 = vmatpush1.msra.mxu0 0.0
    %1213 = vmatprep.subr.mxu0 0.0
    %1214 = vmatpush1.msra.mxu0 0.0
    %1215 = vmatprep.subr.mxu0 0.0
    %1216 = vmatpush1.msra.mxu0 0.0
    %1217 = vmatprep.mubr.f32.mxu0 0.0
    %1218 = vmatmul.mubr.f32.gmra.mrb[0].mxu0 %v1073
    %v1219 = vpop.f32.mrb[0].mxu0
    %v1220 = vadd.f32 0.0, %v1219
    %v1221 = vpop.f32.mrb[0].mxu0
    %1222 = vdwg.mxu0
    %v1223 = vadd.f32 %v1148, %v1220
    %v1224 = vxor.u32 %v1223, 2147483648
    %v1225 = vmul.f32 %v1224, 1.442695
    %v1226 = vpow.pop %v1225
    %v1227 = vadd.f32 %v1226, 1.0
    %v1228 = vrcp.pop %v1227
    %v1229 = vmul.f32 1.0, %v1228
    %v1230 = vtanh.pop %v1223
    %v1231 = vmul.f32 %v1229, %v1052
    %1233 = vrot.lane.b32.xlu0 %v1230, 32
    %v1234 = vpop.permute.xlu0 %1233
    %v1236 = vmul.f32 %v1229, %v1234
    %1238 = vrot.lane.b32.xlu0 %v1236, 32
    %v1239 = vpop.permute.xlu0 %1238
    %v1241 = vadd.f32 %v1231, %v1239
    %v1242 = vtanh.pop %v1241
    %1244 = vrot.lane.b32.xlu0 %v1242, 32
    %v1245 = vpop.permute.xlu0 %1244
    %v1247 = vmul.f32 %v1229, %v1245
    %v1248 = vld [vmem:[%s4] sm:$0xff]
    %v1249 = vld [vmem:[%s4 + $0x8] sm:$0xff]
    %v1250 = vld [vmem:[%s4 + $0x10] sm:$0xff]
    %v1251 = vld [vmem:[%s4 + $0x18] sm:$0xff]
    %v1252 = vld [vmem:[%s5] sm:$0x1]
    %v1254 = vlaneseq
    %v1255 = vshrl.u32 %v1254, 7
    %v1256 = vsub.s32 0, %v1255
    %v1257 = vrot.slane %v1252, %v1256
    %1260 = vrot.lane.b32.xlu0 %v1247, 64
    %v1261 = vpop.permute.xlu0 %1260
    %v1262 = vsel %vm201, %v1261, 0
    %1264 = vmatprep.subr.mxu0 0.0
    %1265 = vmatpush1.msra.mxu0 %v1248
    %1266 = vmatprep.subr.mxu0 0.0
    %1267 = vmatpush1.msra.mxu0 %v1249
    %1268 = vmatprep.subr.mxu0 0.0
    %1269 = vmatpush1.msra.mxu0 %v1250
    %1270 = vmatprep.subr.mxu0 0.0
    %1271 = vmatpush1.msra.mxu0 %v1251
    %1272 = vmatprep.subr.mxu0 0.0
    %1273 = vmatpush1.msra.mxu0 0.0
    %1274 = vmatprep.subr.mxu0 0.0
    %1275 = vmatpush1.msra.mxu0 0.0
    %1276 = vmatprep.subr.mxu0 0.0
    %1277 = vmatpush1.msra.mxu0 0.0
    %1278 = vmatprep.subr.mxu0 0.0
    %1279 = vmatpush1.msra.mxu0 0.0
    %1280 = vmatprep.subr.mxu0 0.0
    %1281 = vmatpush1.msra.mxu0 0.0
    %1282 = vmatprep.subr.mxu0 0.0
    %1283 = vmatpush1.msra.mxu0 0.0
    %1284 = vmatprep.subr.mxu0 0.0
    %1285 = vmatpush1.msra.mxu0 0.0
    %1286 = vmatprep.subr.mxu0 0.0
    %1287 = vmatpush1.msra.mxu0 0.0
    %1288 = vmatprep.subr.mxu0 0.0
    %1289 = vmatpush1.msra.mxu0 0.0
    %1290 = vmatprep.subr.mxu0 0.0
    %1291 = vmatpush1.msra.mxu0 0.0
    %1292 = vmatprep.subr.mxu0 0.0
    %1293 = vmatpush1.msra.mxu0 0.0
    %1294 = vmatprep.subr.mxu0 0.0
    %1295 = vmatpush1.msra.mxu0 0.0
    %1296 = vmatprep.subr.mxu0 0.0
    %1297 = vmatpush1.msra.mxu0 0.0
    %1298 = vmatprep.subr.mxu0 0.0
    %1299 = vmatpush1.msra.mxu0 0.0
    %1300 = vmatprep.subr.mxu0 0.0
    %1301 = vmatpush1.msra.mxu0 0.0
    %1302 = vmatprep.subr.mxu0 0.0
    %1303 = vmatpush1.msra.mxu0 0.0
    %1304 = vmatprep.subr.mxu0 0.0
    %1305 = vmatpush1.msra.mxu0 0.0
    %1306 = vmatprep.subr.mxu0 0.0
    %1307 = vmatpush1.msra.mxu0 0.0
    %1308 = vmatprep.subr.mxu0 0.0
    %1309 = vmatpush1.msra.mxu0 0.0
    %1310 = vmatprep.subr.mxu0 0.0
    %1311 = vmatpush1.msra.mxu0 0.0
    %1312 = vmatprep.subr.mxu0 0.0
    %1313 = vmatpush1.msra.mxu0 0.0
    %1314 = vmatprep.subr.mxu0 0.0
    %1315 = vmatpush1.msra.mxu0 0.0
    %1316 = vmatprep.subr.mxu0 0.0
    %1317 = vmatpush1.msra.mxu0 0.0
    %1318 = vmatprep.subr.mxu0 0.0
    %1319 = vmatpush1.msra.mxu0 0.0
    %1320 = vmatprep.subr.mxu0 0.0
    %1321 = vmatpush1.msra.mxu0 0.0
    %1322 = vmatprep.subr.mxu0 0.0
    %1323 = vmatpush1.msra.mxu0 0.0
    %1324 = vmatprep.subr.mxu0 0.0
    %1325 = vmatpush1.msra.mxu0 0.0
    %1326 = vmatprep.subr.mxu0 0.0
    %1327 = vmatpush1.msra.mxu0 0.0
    %1328 = vmatprep.mubr.f32.mxu0 0.0
    %1329 = vmatmul.mubr.f32.gmra.mrb[0].mxu0 %v1262
    %v1330 = vpop.f32.mrb[0].mxu0
    %v1331 = vadd.f32 %v1257, %v1330
    %v1332 = vpop.f32.mrb[0].mxu0
    %1333 = vdwg.mxu0
    %s1334 = scalar_lea.vmem [#allocation3], 40
    %1335 = vst [vmem:[%s1334] sm:$0xff] %v1331
    %s1336 = scalar_lea.vmem [#allocation2], 48
    %v1337 = vld [vmem:[%s1336] sm:$0xff]
    %v1338 = vld [vmem:[%s2] sm:$0xff]
    %v1339 = vld [vmem:[%s2 + $0x8] sm:$0xff]
    %v1340 = vld [vmem:[%s2 + $0x10] sm:$0xff]
    %v1341 = vld [vmem:[%s2 + $0x18] sm:$0xff]
    %1342 = vmatprep.subr.mxu0 0.0
    %1343 = vmatpush1.msra.mxu0 %v1338
    %1344 = vmatprep.subr.mxu0 0.0
    %1345 = vmatpush1.msra.mxu0 %v1339
    %1346 = vmatprep.subr.mxu0 0.0
    %1347 = vmatpush1.msra.mxu0 %v1340
    %1348 = vmatprep.subr.mxu0 0.0
    %1349 = vmatpush1.msra.mxu0 %v1341
    %1350 = vmatprep.subr.mxu0 0.0
    %1351 = vmatpush1.msra.mxu0 0.0
    %1352 = vmatprep.subr.mxu0 0.0
    %1353 = vmatpush1.msra.mxu0 0.0
    %1354 = vmatprep.subr.mxu0 0.0
    %1355 = vmatpush1.msra.mxu0 0.0
    %1356 = vmatprep.subr.mxu0 0.0
    %1357 = vmatpush1.msra.mxu0 0.0
    %1358 = vmatprep.subr.mxu0 0.0
    %1359 = vmatpush1.msra.mxu0 0.0
    %1360 = vmatprep.subr.mxu0 0.0
    %1361 = vmatpush1.msra.mxu0 0.0
    %1362 = vmatprep.subr.mxu0 0.0
    %1363 = vmatpush1.msra.mxu0 0.0
    %1364 = vmatprep.subr.mxu0 0.0
    %1365 = vmatpush1.msra.mxu0 0.0
    %1366 = vmatprep.subr.mxu0 0.0
    %1367 = vmatpush1.msra.mxu0 0.0
    %1368 = vmatprep.subr.mxu0 0.0
    %1369 = vmatpush1.msra.mxu0 0.0
    %1370 = vmatprep.subr.mxu0 0.0
    %1371 = vmatpush1.msra.mxu0 0.0
    %1372 = vmatprep.subr.mxu0 0.0
    %1373 = vmatpush1.msra.mxu0 0.0
    %1374 = vmatprep.subr.mxu0 0.0
    %1375 = vmatpush1.msra.mxu0 0.0
    %1376 = vmatprep.subr.mxu0 0.0
    %1377 = vmatpush1.msra.mxu0 0.0
    %1378 = vmatprep.subr.mxu0 0.0
    %1379 = vmatpush1.msra.mxu0 0.0
    %1380 = vmatprep.subr.mxu0 0.0
    %1381 = vmatpush1.msra.mxu0 0.0
    %1382 = vmatprep.subr.mxu0 0.0
    %1383 = vmatpush1.msra.mxu0 0.0
    %1384 = vmatprep.subr.mxu0 0.0
    %1385 = vmatpush1.msra.mxu0 0.0
    %1386 = vmatprep.subr.mxu0 0.0
    %1387 = vmatpush1.msra.mxu0 0.0
    %1388 = vmatprep.subr.mxu0 0.0
    %1389 = vmatpush1.msra.mxu0 0.0
    %1390 = vmatprep.subr.mxu0 0.0
    %1391 = vmatpush1.msra.mxu0 0.0
    %1392 = vmatprep.subr.mxu0 0.0
    %1393 = vmatpush1.msra.mxu0 0.0
    %1394 = vmatprep.subr.mxu0 0.0
    %1395 = vmatpush1.msra.mxu0 0.0
    %1396 = vmatprep.subr.mxu0 0.0
    %1397 = vmatpush1.msra.mxu0 0.0
    %1398 = vmatprep.subr.mxu0 0.0
    %1399 = vmatpush1.msra.mxu0 0.0
    %1400 = vmatprep.subr.mxu0 0.0
    %1401 = vmatpush1.msra.mxu0 0.0
    %1402 = vmatprep.subr.mxu0 0.0
    %1403 = vmatpush1.msra.mxu0 0.0
    %1404 = vmatprep.subr.mxu0 0.0
    %1405 = vmatpush1.msra.mxu0 0.0
    %1406 = vmatprep.mubr.f32.mxu0 0.0
    %1407 = vmatmul.mubr.f32.gmra.mrb[0].mxu0 %v1262
    %v1408 = vpop.f32.mrb[0].mxu0
    %v1409 = vadd.f32 0.0, %v1408
    %v1410 = vpop.f32.mrb[0].mxu0
    %1411 = vdwg.mxu0
    %v1412 = vadd.f32 %v1337, %v1409
    %v1413 = vxor.u32 %v1412, 2147483648
    %v1414 = vmul.f32 %v1413, 1.442695
    %v1415 = vpow.pop %v1414
    %v1416 = vadd.f32 %v1415, 1.0
    %v1417 = vrcp.pop %v1416
    %v1418 = vmul.f32 1.0, %v1417
    %v1419 = vtanh.pop %v1412
    %v1420 = vmul.f32 %v1418, %v1241
    %1422 = vrot.lane.b32.xlu0 %v1419, 32
    %v1423 = vpop.permute.xlu0 %1422
    %v1425 = vmul.f32 %v1418, %v1423
    %1427 = vrot.lane.b32.xlu0 %v1425, 32
    %v1428 = vpop.permute.xlu0 %1427
    %v1430 = vadd.f32 %v1420, %v1428
    %v1431 = vtanh.pop %v1430
    %1433 = vrot.lane.b32.xlu0 %v1431, 32
    %v1434 = vpop.permute.xlu0 %1433
    %v1436 = vmul.f32 %v1418, %v1434
    %v1437 = vld [vmem:[%s4] sm:$0xff]
    %v1438 = vld [vmem:[%s4 + $0x8] sm:$0xff]
    %v1439 = vld [vmem:[%s4 + $0x10] sm:$0xff]
    %v1440 = vld [vmem:[%s4 + $0x18] sm:$0xff]
    %v1441 = vld [vmem:[%s5] sm:$0x1]
    %v1443 = vlaneseq
    %v1444 = vshrl.u32 %v1443, 7
    %v1445 = vsub.s32 0, %v1444
    %v1446 = vrot.slane %v1441, %v1445
    %1449 = vrot.lane.b32.xlu0 %v1436, 64
    %v1450 = vpop.permute.xlu0 %1449
    %v1451 = vsel %vm201, %v1450, 0
    %1453 = vmatprep.subr.mxu0 0.0
    %1454 = vmatpush1.msra.mxu0 %v1437
    %1455 = vmatprep.subr.mxu0 0.0
    %1456 = vmatpush1.msra.mxu0 %v1438
    %1457 = vmatprep.subr.mxu0 0.0
    %1458 = vmatpush1.msra.mxu0 %v1439
    %1459 = vmatprep.subr.mxu0 0.0
    %1460 = vmatpush1.msra.mxu0 %v1440
    %1461 = vmatprep.subr.mxu0 0.0
    %1462 = vmatpush1.msra.mxu0 0.0
    %1463 = vmatprep.subr.mxu0 0.0
    %1464 = vmatpush1.msra.mxu0 0.0
    %1465 = vmatprep.subr.mxu0 0.0
    %1466 = vmatpush1.msra.mxu0 0.0
    %1467 = vmatprep.subr.mxu0 0.0
    %1468 = vmatpush1.msra.mxu0 0.0
    %1469 = vmatprep.subr.mxu0 0.0
    %1470 = vmatpush1.msra.mxu0 0.0
    %1471 = vmatprep.subr.mxu0 0.0
    %1472 = vmatpush1.msra.mxu0 0.0
    %1473 = vmatprep.subr.mxu0 0.0
    %1474 = vmatpush1.msra.mxu0 0.0
    %1475 = vmatprep.subr.mxu0 0.0
    %1476 = vmatpush1.msra.mxu0 0.0
    %1477 = vmatprep.subr.mxu0 0.0
    %1478 = vmatpush1.msra.mxu0 0.0
    %1479 = vmatprep.subr.mxu0 0.0
    %1480 = vmatpush1.msra.mxu0 0.0
    %1481 = vmatprep.subr.mxu0 0.0
    %1482 = vmatpush1.msra.mxu0 0.0
    %1483 = vmatprep.subr.mxu0 0.0
    %1484 = vmatpush1.msra.mxu0 0.0
    %1485 = vmatprep.subr.mxu0 0.0
    %1486 = vmatpush1.msra.mxu0 0.0
    %1487 = vmatprep.subr.mxu0 0.0
    %1488 = vmatpush1.msra.mxu0 0.0
    %1489 = vmatprep.subr.mxu0 0.0
    %1490 = vmatpush1.msra.mxu0 0.0
    %1491 = vmatprep.subr.mxu0 0.0
    %1492 = vmatpush1.msra.mxu0 0.0
    %1493 = vmatprep.subr.mxu0 0.0
    %1494 = vmatpush1.msra.mxu0 0.0
    %1495 = vmatprep.subr.mxu0 0.0
    %1496 = vmatpush1.msra.mxu0 0.0
    %1497 = vmatprep.subr.mxu0 0.0
    %1498 = vmatpush1.msra.mxu0 0.0
    %1499 = vmatprep.subr.mxu0 0.0
    %1500 = vmatpush1.msra.mxu0 0.0
    %1501 = vmatprep.subr.mxu0 0.0
    %1502 = vmatpush1.msra.mxu0 0.0
    %1503 = vmatprep.subr.mxu0 0.0
    %1504 = vmatpush1.msra.mxu0 0.0
    %1505 = vmatprep.subr.mxu0 0.0
    %1506 = vmatpush1.msra.mxu0 0.0
    %1507 = vmatprep.subr.mxu0 0.0
    %1508 = vmatpush1.msra.mxu0 0.0
    %1509 = vmatprep.subr.mxu0 0.0
    %1510 = vmatpush1.msra.mxu0 0.0
    %1511 = vmatprep.subr.mxu0 0.0
    %1512 = vmatpush1.msra.mxu0 0.0
    %1513 = vmatprep.subr.mxu0 0.0
    %1514 = vmatpush1.msra.mxu0 0.0
    %1515 = vmatprep.subr.mxu0 0.0
    %1516 = vmatpush1.msra.mxu0 0.0
    %1517 = vmatprep.mubr.f32.mxu0 0.0
    %1518 = vmatmul.mubr.f32.gmra.mrb[0].mxu0 %v1451
    %v1519 = vpop.f32.mrb[0].mxu0
    %v1520 = vadd.f32 %v1446, %v1519
    %v1521 = vpop.f32.mrb[0].mxu0
    %1522 = vdwg.mxu0
    %s1523 = scalar_lea.vmem [#allocation3], 48
    %1524 = vst [vmem:[%s1523] sm:$0xff] %v1520
    %s1525 = scalar_lea.vmem [#allocation2], 56
    %v1526 = vld [vmem:[%s1525] sm:$0xff]
    %v1527 = vld [vmem:[%s2] sm:$0xff]
    %v1528 = vld [vmem:[%s2 + $0x8] sm:$0xff]
    %v1529 = vld [vmem:[%s2 + $0x10] sm:$0xff]
    %v1530 = vld [vmem:[%s2 + $0x18] sm:$0xff]
    %1531 = vmatprep.subr.mxu0 0.0
    %1532 = vmatpush1.msra.mxu0 %v1527
    %1533 = vmatprep.subr.mxu0 0.0
    %1534 = vmatpush1.msra.mxu0 %v1528
    %1535 = vmatprep.subr.mxu0 0.0
    %1536 = vmatpush1.msra.mxu0 %v1529
    %1537 = vmatprep.subr.mxu0 0.0
    %1538 = vmatpush1.msra.mxu0 %v1530
    %1539 = vmatprep.subr.mxu0 0.0
    %1540 = vmatpush1.msra.mxu0 0.0
    %1541 = vmatprep.subr.mxu0 0.0
    %1542 = vmatpush1.msra.mxu0 0.0
    %1543 = vmatprep.subr.mxu0 0.0
    %1544 = vmatpush1.msra.mxu0 0.0
    %1545 = vmatprep.subr.mxu0 0.0
    %1546 = vmatpush1.msra.mxu0 0.0
    %1547 = vmatprep.subr.mxu0 0.0
    %1548 = vmatpush1.msra.mxu0 0.0
    %1549 = vmatprep.subr.mxu0 0.0
    %1550 = vmatpush1.msra.mxu0 0.0
    %1551 = vmatprep.subr.mxu0 0.0
    %1552 = vmatpush1.msra.mxu0 0.0
    %1553 = vmatprep.subr.mxu0 0.0
    %1554 = vmatpush1.msra.mxu0 0.0
    %1555 = vmatprep.subr.mxu0 0.0
    %1556 = vmatpush1.msra.mxu0 0.0
    %1557 = vmatprep.subr.mxu0 0.0
    %1558 = vmatpush1.msra.mxu0 0.0
    %1559 = vmatprep.subr.mxu0 0.0
    %1560 = vmatpush1.msra.mxu0 0.0
    %1561 = vmatprep.subr.mxu0 0.0
    %1562 = vmatpush1.msra.mxu0 0.0
    %1563 = vmatprep.subr.mxu0 0.0
    %1564 = vmatpush1.msra.mxu0 0.0
    %1565 = vmatprep.subr.mxu0 0.0
    %1566 = vmatpush1.msra.mxu0 0.0
    %1567 = vmatprep.subr.mxu0 0.0
    %1568 = vmatpush1.msra.mxu0 0.0
    %1569 = vmatprep.subr.mxu0 0.0
    %1570 = vmatpush1.msra.mxu0 0.0
    %1571 = vmatprep.subr.mxu0 0.0
    %1572 = vmatpush1.msra.mxu0 0.0
    %1573 = vmatprep.subr.mxu0 0.0
    %1574 = vmatpush1.msra.mxu0 0.0
    %1575 = vmatprep.subr.mxu0 0.0
    %1576 = vmatpush1.msra.mxu0 0.0
    %1577 = vmatprep.subr.mxu0 0.0
    %1578 = vmatpush1.msra.mxu0 0.0
    %1579 = vmatprep.subr.mxu0 0.0
    %1580 = vmatpush1.msra.mxu0 0.0
    %1581 = vmatprep.subr.mxu0 0.0
    %1582 = vmatpush1.msra.mxu0 0.0
    %1583 = vmatprep.subr.mxu0 0.0
    %1584 = vmatpush1.msra.mxu0 0.0
    %1585 = vmatprep.subr.mxu0 0.0
    %1586 = vmatpush1.msra.mxu0 0.0
    %1587 = vmatprep.subr.mxu0 0.0
    %1588 = vmatpush1.msra.mxu0 0.0
    %1589 = vmatprep.subr.mxu0 0.0
    %1590 = vmatpush1.msra.mxu0 0.0
    %1591 = vmatprep.subr.mxu0 0.0
    %1592 = vmatpush1.msra.mxu0 0.0
    %1593 = vmatprep.subr.mxu0 0.0
    %1594 = vmatpush1.msra.mxu0 0.0
    %1595 = vmatprep.mubr.f32.mxu0 0.0
    %1596 = vmatmul.mubr.f32.gmra.mrb[0].mxu0 %v1451
    %v1597 = vpop.f32.mrb[0].mxu0
    %v1598 = vadd.f32 0.0, %v1597
    %v1599 = vpop.f32.mrb[0].mxu0
    %1600 = vdwg.mxu0
    %v1601 = vadd.f32 %v1526, %v1598
    %v1602 = vxor.u32 %v1601, 2147483648
    %v1603 = vmul.f32 %v1602, 1.442695
    %v1604 = vpow.pop %v1603
    %v1605 = vadd.f32 %v1604, 1.0
    %v1606 = vrcp.pop %v1605
    %v1607 = vmul.f32 1.0, %v1606
    %v1608 = vtanh.pop %v1601
    %v1609 = vmul.f32 %v1607, %v1430
    %1611 = vrot.lane.b32.xlu0 %v1608, 32
    %v1612 = vpop.permute.xlu0 %1611
    %v1614 = vmul.f32 %v1607, %v1612
    %1616 = vrot.lane.b32.xlu0 %v1614, 32
    %v1617 = vpop.permute.xlu0 %1616
    %v1619 = vadd.f32 %v1609, %v1617
    %v1620 = vtanh.pop %v1619
    %1622 = vrot.lane.b32.xlu0 %v1620, 32
    %v1623 = vpop.permute.xlu0 %1622
    %v1625 = vmul.f32 %v1607, %v1623
    %v1626 = vld [vmem:[%s4] sm:$0xff]
    %v1627 = vld [vmem:[%s4 + $0x8] sm:$0xff]
    %v1628 = vld [vmem:[%s4 + $0x10] sm:$0xff]
    %v1629 = vld [vmem:[%s4 + $0x18] sm:$0xff]
    %v1630 = vld [vmem:[%s5] sm:$0x1]
    %v1632 = vlaneseq
    %v1633 = vshrl.u32 %v1632, 7
    %v1634 = vsub.s32 0, %v1633
    %v1635 = vrot.slane %v1630, %v1634
    %1638 = vrot.lane.b32.xlu0 %v1625, 64
    %v1639 = vpop.permute.xlu0 %1638
    %v1640 = vsel %vm201, %v1639, 0
    %1642 = vmatprep.subr.mxu0 0.0
    %1643 = vmatpush1.msra.mxu0 %v1626
    %1644 = vmatprep.subr.mxu0 0.0
    %1645 = vmatpush1.msra.mxu0 %v1627
    %1646 = vmatprep.subr.mxu0 0.0
    %1647 = vmatpush1.msra.mxu0 %v1628
    %1648 = vmatprep.subr.mxu0 0.0
    %1649 = vmatpush1.msra.mxu0 %v1629
    %1650 = vmatprep.subr.mxu0 0.0
    %1651 = vmatpush1.msra.mxu0 0.0
    %1652 = vmatprep.subr.mxu0 0.0
    %1653 = vmatpush1.msra.mxu0 0.0
    %1654 = vmatprep.subr.mxu0 0.0
    %1655 = vmatpush1.msra.mxu0 0.0
    %1656 = vmatprep.subr.mxu0 0.0
    %1657 = vmatpush1.msra.mxu0 0.0
    %1658 = vmatprep.subr.mxu0 0.0
    %1659 = vmatpush1.msra.mxu0 0.0
    %1660 = vmatprep.subr.mxu0 0.0
    %1661 = vmatpush1.msra.mxu0 0.0
    %1662 = vmatprep.subr.mxu0 0.0
    %1663 = vmatpush1.msra.mxu0 0.0
    %1664 = vmatprep.subr.mxu0 0.0
    %1665 = vmatpush1.msra.mxu0 0.0
    %1666 = vmatprep.subr.mxu0 0.0
    %1667 = vmatpush1.msra.mxu0 0.0
    %1668 = vmatprep.subr.mxu0 0.0
    %1669 = vmatpush1.msra.mxu0 0.0
    %1670 = vmatprep.subr.mxu0 0.0
    %1671 = vmatpush1.msra.mxu0 0.0
    %1672 = vmatprep.subr.mxu0 0.0
    %1673 = vmatpush1.msra.mxu0 0.0
    %1674 = vmatprep.subr.mxu0 0.0
    %1675 = vmatpush1.msra.mxu0 0.0
    %1676 = vmatprep.subr.mxu0 0.0
    %1677 = vmatpush1.msra.mxu0 0.0
    %1678 = vmatprep.subr.mxu0 0.0
    %1679 = vmatpush1.msra.mxu0 0.0
    %1680 = vmatprep.subr.mxu0 0.0
    %1681 = vmatpush1.msra.mxu0 0.0
    %1682 = vmatprep.subr.mxu0 0.0
    %1683 = vmatpush1.msra.mxu0 0.0
    %1684 = vmatprep.subr.mxu0 0.0
    %1685 = vmatpush1.msra.mxu0 0.0
    %1686 = vmatprep.subr.mxu0 0.0
    %1687 = vmatpush1.msra.mxu0 0.0
    %1688 = vmatprep.subr.mxu0 0.0
    %1689 = vmatpush1.msra.mxu0 0.0
    %1690 = vmatprep.subr.mxu0 0.0
    %1691 = vmatpush1.msra.mxu0 0.0
    %1692 = vmatprep.subr.mxu0 0.0
    %1693 = vmatpush1.msra.mxu0 0.0
    %1694 = vmatprep.subr.mxu0 0.0
    %1695 = vmatpush1.msra.mxu0 0.0
    %1696 = vmatprep.subr.mxu0 0.0
    %1697 = vmatpush1.msra.mxu0 0.0
    %1698 = vmatprep.subr.mxu0 0.0
    %1699 = vmatpush1.msra.mxu0 0.0
    %1700 = vmatprep.subr.mxu0 0.0
    %1701 = vmatpush1.msra.mxu0 0.0
    %1702 = vmatprep.subr.mxu0 0.0
    %1703 = vmatpush1.msra.mxu0 0.0
    %1704 = vmatprep.subr.mxu0 0.0
    %1705 = vmatpush1.msra.mxu0 0.0
    %1706 = vmatprep.mubr.f32.mxu0 0.0
    %1707 = vmatmul.mubr.f32.gmra.mrb[0].mxu0 %v1640
    %v1708 = vpop.f32.mrb[0].mxu0
    %v1709 = vadd.f32 %v1635, %v1708
    %v1710 = vpop.f32.mrb[0].mxu0
    %1711 = vdwg.mxu0
    %s1712 = scalar_lea.vmem [#allocation3], 56
    %1713 = vst [vmem:[%s1712] sm:$0xff] %v1709
    %1715 = vst.msk [vmem:[#allocation5] sm:$0xff] %vm201, %v1639
    %1717 = vrot.lane.b32.xlu0 %v1619, 96
    %v1718 = vpop.permute.xlu0 %1717
    %1720 = vst.msk [vmem:[#allocation7] sm:$0xff] %vm201, %v1718
    // Predicated region
    $region34: #{tpu_custom_call.1} parent=1 // pred_check
      _
    $region35: #{tpu_custom_call.1} parent=1 // pred_check_branch
      %1722 = sbr.rel (0) target = $region37
    $region36: #{tpu_custom_call.1} parent=1 // pred_region
      %s1724 = ssub.s32 1024, 1024
      %1725 = vsyncadd [#allocation4], %s1724
      %s1726 = sshll.u32 [#allocation3], 4
      %s1727 = int_to_ptr.vmem [resolvable:$true] %s1726
      %1732 = dma.vmem_to_hbm [thread:$0]  %s1727, 1024, %s8, [#allocation4], 128, 128, 8
    $region37: #{tpu_custom_call.1} parent=1 // pred_fallthru
      _
    // Predicated region
    $region38: #{tpu_custom_call.1} parent=1 // pred_check
      _
    $region39: #{tpu_custom_call.1} parent=1 // pred_check_branch
      %1734 = sbr.rel (0) target = $region41
    $region40: #{tpu_custom_call.1} parent=1 // pred_region
      %s1736 = ssub.s32 128, 128
      %1737 = vsyncadd [#allocation6], %s1736
      %s1739 = sshll.u32 [#allocation5], 4
      %s1740 = int_to_ptr.vmem [resolvable:$true] %s1739
      %1742 = dma.vmem_to_hbm [thread:$0]  %s1740, 128, %s9, [#allocation6]
    $region41: #{tpu_custom_call.1} parent=1 // pred_fallthru
      _
    // Predicated region
    $region42: #{tpu_custom_call.1} parent=1 // pred_check
      _
    $region43: #{tpu_custom_call.1} parent=1 // pred_check_branch
      %1744 = sbr.rel (0) target = $region45
    $region44: #{tpu_custom_call.1} parent=1 // pred_region
      %s1746 = ssub.s32 128, 128
      %1747 = vsyncadd [#allocation6], %s1746
      %s1749 = sshll.u32 [#allocation7], 4
      %s1750 = int_to_ptr.vmem [resolvable:$true] %s1749
      %1752 = dma.vmem_to_hbm [thread:$0]  %s1750, 128, %s10, [#allocation6]
    $region45: #{tpu_custom_call.1} parent=1 // pred_fallthru
      _
    // Predicated region
    $region46: #{tpu_custom_call.1} parent=1 // pred_check
      _
    $region47: #{tpu_custom_call.1} parent=1 // pred_check_branch
      %1754 = sbr.rel (0) target = $region49
    $region48: #{tpu_custom_call.1} parent=1 // pred_region
      %1755 = dma.done [#allocation4], 1024
    $region49: #{tpu_custom_call.1} parent=1 // pred_fallthru
      _
    // Predicated region
    $region50: #{tpu_custom_call.1} parent=1 // pred_check
      _
    $region51: #{tpu_custom_call.1} parent=1 // pred_check_branch
      %1757 = sbr.rel (0) target = $region53
    $region52: #{tpu_custom_call.1} parent=1 // pred_region
      %1758 = dma.done [#allocation6], 128
    $region53: #{tpu_custom_call.1} parent=1 // pred_fallthru
      _
    // Predicated region
    $region54: #{tpu_custom_call.1} parent=1 // pred_check
      _
    $region55: #{tpu_custom_call.1} parent=1 // pred_check_branch
      %1760 = sbr.rel (0) target = $region57
    $region56: #{tpu_custom_call.1} parent=1 // pred_region
      %1761 = dma.done [#allocation6], 128
    $region57: #{tpu_custom_call.1} parent=1 // pred_fallthru
      _
    %1762 = vsyncpa [#allocation4], 1
    %1763 = vsyncpa [#allocation6], 1

</llo_original>
